<compile_context>
chip_gen: v5e
topology: v5e:2x2
jax: 0.10.0
libtpu: 0.0.40
codegen_flags: <defaults>
</compile_context>

<pallas_src>
import jax
import jax.numpy as jnp
from jax.experimental import pallas as pl
from jax.experimental.pallas import tpu as pltpu


def _round_up(x, m):
    return (x + m - 1) // m * m


# ----------------------------------------------------------------------------
# Fused forward kernel (factory closes over static config)
# ----------------------------------------------------------------------------

def _make_fused_kernel(n_convs, ln_channels, t_real, t_pad, eps=1e-5):
    inv_c = 1.0 / float(ln_channels)

    def conv_ln_block(x, wcat, b, gamma, beta, m_first, m_last, m_valid):
        # x: (Tpad, CP) f32; wcat: (3*CP, CP) bf16; b/gamma/beta: (1, CP) f32
        tp = x.shape[0]
        # Conv1d(k=3, pad=1): taps are x[t-1], x[t], x[t+1] (zero at sequence ends).
        x_prev = jnp.where(m_first, 0.0, pltpu.roll(x, shift=1, axis=0))
        x_next = jnp.where(m_last, 0.0, pltpu.roll(x, shift=tp - 1, axis=0))
        x_cat = jnp.concatenate([x_prev, x, x_next], axis=-1)          # (Tpad, 3*CP)
        y = jnp.dot(x_cat.astype(jnp.bfloat16), wcat,
                    preferred_element_type=jnp.float32) + b            # (Tpad, CP)
        y = jnp.maximum(y, 0.0)                                         # ReLU
        # LayerNorm over the real channel count (padded lanes of y are exactly zero,
        # so sums over all CP lanes equal sums over the real lanes).
        mean = jnp.sum(y, axis=-1, keepdims=True) * inv_c
        msq = jnp.sum(y * y, axis=-1, keepdims=True) * inv_c
        var = msq - mean * mean
        yn = (y - mean) * jax.lax.rsqrt(var + eps)
        out = yn * gamma + beta        # gamma/beta zero in padded lanes -> lanes stay 0
        if m_valid is not None:        # keep padded rows exactly zero (zero-pad conv)
            out = jnp.where(m_valid, out, 0.0)
        return out

    def kernel(h_ref, ecw_ref, ecb_ref, ecg_ref, ecbt_ref,
               elw_ref, elb_ref,
               dcw_ref, dcb_ref, dcg_ref, dcbt_ref,
               dow_ref, dob_ref, o_ref):
        x = h_ref[0]                                                   # (Tpad, CP) f32

        # masks hoisted out of the layer loop (JAX does not CSE broadcasts)
        row = jax.lax.broadcasted_iota(jnp.int32, x.shape, 0)
        m_first = row == 0
        m_last = row == (t_pad - 1)
        m_valid = (row < t_real) if t_real < t_pad else None

        # ---- Encoder: n_convs x [conv -> ReLU -> LN] ----
        for i in range(n_convs):
            x = conv_ln_block(x, ecw_ref[i], ecb_ref[i], ecg_ref[i],
                              ecbt_ref[i], m_first, m_last, m_valid)

        # ---- Encoder output projection: filter_channels -> hidden_dim // 2 ----
        x = jnp.dot(x.astype(jnp.bfloat16), elw_ref[...],
                    preferred_element_type=jnp.float32) + elb_ref[...]
        if m_valid is not None:
            x = jnp.where(m_valid, x, 0.0)

        # ---- Decoder conv block ----
        x = conv_ln_block(x, dcw_ref[...], dcb_ref[...], dcg_ref[...],
                          dcbt_ref[...], m_first, m_last, m_valid)

        # ---- Decoder output projection (Cout=1): VPU multiply + lane reduce ----
        red = jnp.sum(x * dow_ref[...], axis=-1, keepdims=True) + dob_ref[...]
        o_ref[0] = red                                                 # (Tpad, 1)

    return kernel


# ----------------------------------------------------------------------------
# Parameters (channel-padded / tap-concatenated layout for the fused kernel)
# ----------------------------------------------------------------------------

def init_params(key, *, vocab_size, n_convs, max_seq_len, in_channels,
                filter_channels, hidden_dim, speaker_emb_size):
    hid = hidden_dim // 2
    cp = _round_up(max(in_channels, filter_channels, hid), 128)
    ks = iter(jax.random.split(key, 64))

    def nrm(shape):
        return jax.random.normal(next(ks), shape, jnp.float32) * 0.1

    def pad_cols(a):
        return jnp.pad(a, ((0, 0), (0, cp - a.shape[1])))

    def conv_w(cin, cout):
        # PyTorch Conv1d weight (Cout, Cin, 3); tap k=0 -> x[t-1], k=1 -> x[t],
        # k=2 -> x[t+1].  Stored as one zero-padded (3*CP, CP) matrix.
        taps = []
        for _ in range(3):
            w = pad_cols(nrm((cin, cout)))                     # (cin, CP)
            w = jnp.pad(w, ((0, cp - cin), (0, 0)))            # (CP, CP)
            taps.append(w)
        return jnp.concatenate(taps, axis=0)                   # (3*CP, CP)

    def ln_gamma():
        return pad_cols(jnp.ones((1, filter_channels), jnp.float32))

    params = {
        "tok_emb": pad_cols(nrm((vocab_size, in_channels))),
        "pos_emb": pad_cols(nrm((max_seq_len, in_channels))),
        "spk_w": pad_cols(nrm((speaker_emb_size, in_channels))),
        "spk_b": jnp.zeros((cp,), jnp.float32),
        "enc_conv_w": jnp.stack(
            [conv_w(in_channels if i == 0 else filter_channels, filter_channels)
             for i in range(n_convs)]).astype(jnp.bfloat16),
        "enc_conv_b": jnp.zeros((n_convs, 1, cp), jnp.float32),
        "enc_conv_g": jnp.stack([ln_gamma() for _ in range(n_convs)]),
        "enc_conv_beta": jnp.zeros((n_convs, 1, cp), jnp.float32),
        "enc_lin_w": jnp.pad(pad_cols(nrm((filter_channels, hid))),
                             ((0, cp - filter_channels), (0, 0))).astype(jnp.bfloat16),
        "enc_lin_b": jnp.zeros((1, cp), jnp.float32),
        "dec_conv_w": conv_w(hid, filter_channels).astype(jnp.bfloat16),
        "dec_conv_b": jnp.zeros((1, cp), jnp.float32),
        "dec_conv_g": ln_gamma(),
        "dec_conv_beta": jnp.zeros((1, cp), jnp.float32),
        "dec_out_w": pad_cols(nrm((1, filter_channels))),
        "dec_out_b": jnp.zeros((1, 1), jnp.float32),
    }
    return params, cp


# ----------------------------------------------------------------------------
# Forward
# ----------------------------------------------------------------------------

def duration_predictor_forward(params, x_tokens, spk_emb, *, n_convs, filter_channels):
    """x_tokens: int32 [B, T]; spk_emb: float32 [B, speaker_emb_size] -> [B, T, 1]."""
    B, T = x_tokens.shape
    cp = params["tok_emb"].shape[1]
    t_pad = max(_round_up(T, 8), 8)

    # --- plain-JAX glue: embedding gathers + speaker projection (tiny) ---
    h = jnp.take(params["tok_emb"], x_tokens, axis=0)                   # [B, T, CP]
    h = h + params["pos_emb"][None, :T, :]
    spk = jnp.dot(spk_emb, params["spk_w"]) + params["spk_b"][None, :]  # [B, CP]
    h = h + spk[:, None, :]
    if t_pad > T:
        h = jnp.pad(h, ((0, 0), (0, t_pad - T), (0, 0)))

    kernel = _make_fused_kernel(n_convs, filter_channels, T, t_pad)

    full2 = lambda b: (0, 0)
    full3 = lambda b: (0, 0, 0)
    out = pl.pallas_call(
        kernel,
        out_shape=jax.ShapeDtypeStruct((B, t_pad, 1), jnp.float32),
        grid=(B,),
        in_specs=[
            pl.BlockSpec((1, t_pad, cp), lambda b: (b, 0, 0)),   # activations
            pl.BlockSpec((n_convs, 3 * cp, cp), full3),          # enc conv W (resident)
            pl.BlockSpec((n_convs, 1, cp), full3),               # enc conv bias
            pl.BlockSpec((n_convs, 1, cp), full3),               # enc LN gamma
            pl.BlockSpec((n_convs, 1, cp), full3),               # enc LN beta
            pl.BlockSpec((cp, cp), full2),                       # enc out linear W
            pl.BlockSpec((1, cp), full2),                        # enc out linear b
            pl.BlockSpec((3 * cp, cp), full2),                   # dec conv W
            pl.BlockSpec((1, cp), full2),                        # dec conv bias
            pl.BlockSpec((1, cp), full2),                        # dec LN gamma
            pl.BlockSpec((1, cp), full2),                        # dec LN beta
            pl.BlockSpec((1, cp), full2),                        # dec out W (vector)
            pl.BlockSpec((1, 1), full2),                         # dec out b
        ],
        out_specs=pl.BlockSpec((1, t_pad, 1), lambda b: (b, 0, 0)),
        compiler_params=pltpu.CompilerParams(dimension_semantics=("parallel",)),
    )(h, params["enc_conv_w"], params["enc_conv_b"], params["enc_conv_g"],
      params["enc_conv_beta"], params["enc_lin_w"], params["enc_lin_b"],
      params["dec_conv_w"], params["dec_conv_b"], params["dec_conv_g"],
      params["dec_conv_beta"], params["dec_out_w"], params["dec_out_b"])

    return out[:, :T, :]


# ----------------------------------------------------------------------------

if __name__ == "__main__":
    # small synthetic config
    vocab_size = 11
    n_convs = 2
    max_seq_len = 16
    in_channels = 32
    filter_channels = 32
    hidden_dim = 32
    speaker_emb_size = 64
    B, T = 2, 8

    key = jax.random.PRNGKey(0)
    kp, kx, ky = jax.random.split(key, 3)

    params, _ = init_params(
        kp,
        vocab_size=vocab_size, n_convs=n_convs, max_seq_len=max_seq_len,
        in_channels=in_channels, filter_channels=filter_channels,
        hidden_dim=hidden_dim, speaker_emb_size=speaker_emb_size,
    )

    x_tokens = jax.random.randint(kx, (B, T), 0, vocab_size, dtype=jnp.int32)
    spk_emb = jax.random.normal(ky, (B, speaker_emb_size), jnp.float32)

    out = duration_predictor_forward(params, x_tokens, spk_emb,
                                     n_convs=n_convs, filter_channels=filter_channels)
    out = jax.block_until_ready(out)
    assert out.shape == (B, T, 1), out.shape
    assert jnp.all(jnp.isfinite(out))
    print("KERNEL_OK")
</pallas_src>

<mosaic_0001>
module attributes {stable_mosaic.version = 11 : i64} {
  func.func @kernel(%arg0: i32, %arg1: memref<1x8x128xf32, #tpu.memory_space<vmem>>, %arg2: memref<2x384x128xbf16, #tpu.memory_space<vmem>>, %arg3: memref<2x1x128xf32, #tpu.memory_space<vmem>>, %arg4: memref<2x1x128xf32, #tpu.memory_space<vmem>>, %arg5: memref<2x1x128xf32, #tpu.memory_space<vmem>>, %arg6: memref<128x128xbf16, #tpu.memory_space<vmem>>, %arg7: memref<1x128xf32, #tpu.memory_space<vmem>>, %arg8: memref<384x128xbf16, #tpu.memory_space<vmem>>, %arg9: memref<1x128xf32, #tpu.memory_space<vmem>>, %arg10: memref<1x128xf32, #tpu.memory_space<vmem>>, %arg11: memref<1x128xf32, #tpu.memory_space<vmem>>, %arg12: memref<1x128xf32, #tpu.memory_space<vmem>>, %arg13: memref<1x1xf32, #tpu.memory_space<vmem>>, %arg14: memref<1x8x1xf32, #tpu.memory_space<vmem>>) attributes {dimension_semantics = [#tpu.dimension_semantics<parallel>], iteration_bounds = array<i64: 2>, scalar_prefetch = 0 : i64, scratch_operands = 0 : i64, tpu.core_type = #tpu.core_type<tc>, window_params = [{transform_indices = @transform_0, window_bounds = array<i64: 1, 8, 128>}, {pipeline_mode = #tpu.pipeline_mode<synchronous>, transform_indices = @transform_1, window_bounds = array<i64: 2, 384, 128>}, {pipeline_mode = #tpu.pipeline_mode<synchronous>, transform_indices = @transform_2, window_bounds = array<i64: 2, 1, 128>}, {pipeline_mode = #tpu.pipeline_mode<synchronous>, transform_indices = @transform_3, window_bounds = array<i64: 2, 1, 128>}, {pipeline_mode = #tpu.pipeline_mode<synchronous>, transform_indices = @transform_4, window_bounds = array<i64: 2, 1, 128>}, {pipeline_mode = #tpu.pipeline_mode<synchronous>, transform_indices = @transform_5, window_bounds = array<i64: 128, 128>}, {pipeline_mode = #tpu.pipeline_mode<synchronous>, transform_indices = @transform_6, window_bounds = array<i64: 1, 128>}, {pipeline_mode = #tpu.pipeline_mode<synchronous>, transform_indices = @transform_7, window_bounds = array<i64: 384, 128>}, {pipeline_mode = #tpu.pipeline_mode<synchronous>, transform_indices = @transform_8, window_bounds = array<i64: 1, 128>}, {pipeline_mode = #tpu.pipeline_mode<synchronous>, transform_indices = @transform_9, window_bounds = array<i64: 1, 128>}, {pipeline_mode = #tpu.pipeline_mode<synchronous>, transform_indices = @transform_10, window_bounds = array<i64: 1, 128>}, {pipeline_mode = #tpu.pipeline_mode<synchronous>, transform_indices = @transform_11, window_bounds = array<i64: 1, 128>}, {pipeline_mode = #tpu.pipeline_mode<synchronous>, transform_indices = @transform_12, window_bounds = array<i64: 1, 1>}, {transform_indices = @transform_13, window_bounds = array<i64: 1, 8, 1>}]} {
    %c0 = arith.constant 0 : index
    %c0_0 = arith.constant 0 : index
    %c0_1 = arith.constant 0 : index
    %0 = vector.load %arg1[%c0, %c0_0, %c0_1] : memref<1x8x128xf32, #tpu.memory_space<vmem>>, vector<1x8x128xf32>
    %1 = vector.shape_cast %0 : vector<1x8x128xf32> to vector<8x128xf32>
    %2 = tpu.iota {dimensions = array<i32: 0>} : vector<8x128xi32>
    %c0_i32 = arith.constant 0 : i32
    %3 = vector.broadcast %c0_i32 : i32 to vector<8x128xi32>
    %4 = arith.cmpi eq, %2, %3 : vector<8x128xi32>
    %c7_i32 = arith.constant 7 : i32
    %5 = vector.broadcast %c7_i32 : i32 to vector<8x128xi32>
    %6 = arith.cmpi eq, %2, %5 : vector<8x128xi32>
    %c0_2 = arith.constant 0 : index
    %c0_3 = arith.constant 0 : index
    %c0_4 = arith.constant 0 : index
    %7 = vector.load %arg2[%c0_2, %c0_3, %c0_4] : memref<2x384x128xbf16, #tpu.memory_space<vmem>>, vector<1x384x128xbf16>
    %8 = vector.shape_cast %7 : vector<1x384x128xbf16> to vector<384x128xbf16>
    %c0_5 = arith.constant 0 : index
    %c0_6 = arith.constant 0 : index
    %c0_7 = arith.constant 0 : index
    %9 = vector.load %arg3[%c0_5, %c0_6, %c0_7] : memref<2x1x128xf32, #tpu.memory_space<vmem>>, vector<1x1x128xf32>
    %10 = vector.shape_cast %9 : vector<1x1x128xf32> to vector<1x128xf32>
    %c0_8 = arith.constant 0 : index
    %c0_9 = arith.constant 0 : index
    %c0_10 = arith.constant 0 : index
    %11 = vector.load %arg4[%c0_8, %c0_9, %c0_10] : memref<2x1x128xf32, #tpu.memory_space<vmem>>, vector<1x1x128xf32>
    %12 = vector.shape_cast %11 : vector<1x1x128xf32> to vector<1x128xf32>
    %c0_11 = arith.constant 0 : index
    %c0_12 = arith.constant 0 : index
    %c0_13 = arith.constant 0 : index
    %13 = vector.load %arg5[%c0_11, %c0_12, %c0_13] : memref<2x1x128xf32, #tpu.memory_space<vmem>>, vector<1x1x128xf32>
    %14 = vector.shape_cast %13 : vector<1x1x128xf32> to vector<1x128xf32>
    %c1_i32 = arith.constant 1 : i32
    %15 = tpu.dynamic_rotate %1 by %c1_i32 dim 0 : vector<8x128xf32>, i32 -> vector<8x128xf32>
    %cst = arith.constant 0.000000e+00 : f32
    %16 = vector.broadcast %cst : f32 to vector<8x128xf32>
    %17 = arith.select %4, %16, %15 : vector<8x128xi1>, vector<8x128xf32>
    %c7_i32_14 = arith.constant 7 : i32
    %18 = tpu.dynamic_rotate %1 by %c7_i32_14 dim 0 : vector<8x128xf32>, i32 -> vector<8x128xf32>
    %cst_15 = arith.constant 0.000000e+00 : f32
    %19 = vector.broadcast %cst_15 : f32 to vector<8x128xf32>
    %20 = arith.select %6, %19, %18 : vector<8x128xi1>, vector<8x128xf32>
    %21 = tpu.concatenate %17, %1, %20 in 1 : vector<8x128xf32>, vector<8x128xf32>, vector<8x128xf32> -> vector<8x384xf32>
    %22 = arith.truncf %21 : vector<8x384xf32> to vector<8x384xbf16>
    %cst_16 = arith.constant dense<0.000000e+00> : vector<8x128xf32>
    %23 = tpu.matmul %22, %8, %cst_16 {dimension_numbers = #tpu.dot_dimension_numbers<[1], [0], [0], [1], [0, 0, 1, 1], [], []>} : vector<8x384xbf16>, vector<384x128xbf16>, vector<8x128xf32> -> vector<8x128xf32>
    %24 = vector.broadcast %10 : vector<1x128xf32> to vector<8x128xf32>
    %25 = arith.addf %23, %24 : vector<8x128xf32>
    %cst_17 = arith.constant 0.000000e+00 : f32
    %26 = vector.broadcast %cst_17 : f32 to vector<8x128xf32>
    %27 = arith.maximumf %25, %26 : vector<8x128xf32>
    %cst_18 = arith.constant dense<0.000000e+00> : vector<8xf32>
    %28 = vector.multi_reduction <add>, %27, %cst_18 [1] : vector<8x128xf32> to vector<8xf32>
    %29 = vector.shape_cast %28 : vector<8xf32> to vector<8x1xf32>
    %cst_19 = arith.constant 3.125000e-02 : f32
    %30 = vector.broadcast %cst_19 : f32 to vector<8x1xf32>
    %31 = arith.mulf %29, %30 : vector<8x1xf32>
    %32 = arith.mulf %27, %27 : vector<8x128xf32>
    %cst_20 = arith.constant dense<0.000000e+00> : vector<8xf32>
    %33 = vector.multi_reduction <add>, %32, %cst_20 [1] : vector<8x128xf32> to vector<8xf32>
    %34 = vector.shape_cast %33 : vector<8xf32> to vector<8x1xf32>
    %cst_21 = arith.constant 3.125000e-02 : f32
    %35 = vector.broadcast %cst_21 : f32 to vector<8x1xf32>
    %36 = arith.mulf %34, %35 : vector<8x1xf32>
    %37 = arith.mulf %31, %31 : vector<8x1xf32>
    %38 = arith.subf %36, %37 : vector<8x1xf32>
    %39 = vector.broadcast %31 : vector<8x1xf32> to vector<8x128xf32>
    %40 = arith.subf %27, %39 : vector<8x128xf32>
    %cst_22 = arith.constant 9.99999974E-6 : f32
    %41 = vector.broadcast %cst_22 : f32 to vector<8x1xf32>
    %42 = arith.addf %38, %41 : vector<8x1xf32>
    %43 = math.rsqrt %42 : vector<8x1xf32>
    %44 = vector.broadcast %43 : vector<8x1xf32> to vector<8x128xf32>
    %45 = arith.mulf %40, %44 : vector<8x128xf32>
    %46 = vector.broadcast %12 : vector<1x128xf32> to vector<8x128xf32>
    %47 = arith.mulf %45, %46 : vector<8x128xf32>
    %48 = vector.broadcast %14 : vector<1x128xf32> to vector<8x128xf32>
    %49 = arith.addf %47, %48 : vector<8x128xf32>
    %c1 = arith.constant 1 : index
    %c0_23 = arith.constant 0 : index
    %c0_24 = arith.constant 0 : index
    %50 = vector.load %arg2[%c1, %c0_23, %c0_24] : memref<2x384x128xbf16, #tpu.memory_space<vmem>>, vector<1x384x128xbf16>
    %51 = vector.shape_cast %50 : vector<1x384x128xbf16> to vector<384x128xbf16>
    %c1_25 = arith.constant 1 : index
    %c0_26 = arith.constant 0 : index
    %c0_27 = arith.constant 0 : index
    %52 = vector.load %arg3[%c1_25, %c0_26, %c0_27] : memref<2x1x128xf32, #tpu.memory_space<vmem>>, vector<1x1x128xf32>
    %53 = vector.shape_cast %52 : vector<1x1x128xf32> to vector<1x128xf32>
    %c1_28 = arith.constant 1 : index
    %c0_29 = arith.constant 0 : index
    %c0_30 = arith.constant 0 : index
    %54 = vector.load %arg4[%c1_28, %c0_29, %c0_30] : memref<2x1x128xf32, #tpu.memory_space<vmem>>, vector<1x1x128xf32>
    %55 = vector.shape_cast %54 : vector<1x1x128xf32> to vector<1x128xf32>
    %c1_31 = arith.constant 1 : index
    %c0_32 = arith.constant 0 : index
    %c0_33 = arith.constant 0 : index
    %56 = vector.load %arg5[%c1_31, %c0_32, %c0_33] : memref<2x1x128xf32, #tpu.memory_space<vmem>>, vector<1x1x128xf32>
    %57 = vector.shape_cast %56 : vector<1x1x128xf32> to vector<1x128xf32>
    %c1_i32_34 = arith.constant 1 : i32
    %58 = tpu.dynamic_rotate %49 by %c1_i32_34 dim 0 : vector<8x128xf32>, i32 -> vector<8x128xf32>
    %cst_35 = arith.constant 0.000000e+00 : f32
    %59 = vector.broadcast %cst_35 : f32 to vector<8x128xf32>
    %60 = arith.select %4, %59, %58 : vector<8x128xi1>, vector<8x128xf32>
    %c7_i32_36 = arith.constant 7 : i32
    %61 = tpu.dynamic_rotate %49 by %c7_i32_36 dim 0 : vector<8x128xf32>, i32 -> vector<8x128xf32>
    %cst_37 = arith.constant 0.000000e+00 : f32
    %62 = vector.broadcast %cst_37 : f32 to vector<8x128xf32>
    %63 = arith.select %6, %62, %61 : vector<8x128xi1>, vector<8x128xf32>
    %64 = tpu.concatenate %60, %49, %63 in 1 : vector<8x128xf32>, vector<8x128xf32>, vector<8x128xf32> -> vector<8x384xf32>
    %65 = arith.truncf %64 : vector<8x384xf32> to vector<8x384xbf16>
    %cst_38 = arith.constant dense<0.000000e+00> : vector<8x128xf32>
    %66 = tpu.matmul %65, %51, %cst_38 {dimension_numbers = #tpu.dot_dimension_numbers<[1], [0], [0], [1], [0, 0, 1, 1], [], []>} : vector<8x384xbf16>, vector<384x128xbf16>, vector<8x128xf32> -> vector<8x128xf32>
    %67 = vector.broadcast %53 : vector<1x128xf32> to vector<8x128xf32>
    %68 = arith.addf %66, %67 : vector<8x128xf32>
    %cst_39 = arith.constant 0.000000e+00 : f32
    %69 = vector.broadcast %cst_39 : f32 to vector<8x128xf32>
    %70 = arith.maximumf %68, %69 : vector<8x128xf32>
    %cst_40 = arith.constant dense<0.000000e+00> : vector<8xf32>
    %71 = vector.multi_reduction <add>, %70, %cst_40 [1] : vector<8x128xf32> to vector<8xf32>
    %72 = vector.shape_cast %71 : vector<8xf32> to vector<8x1xf32>
    %cst_41 = arith.constant 3.125000e-02 : f32
    %73 = vector.broadcast %cst_41 : f32 to vector<8x1xf32>
    %74 = arith.mulf %72, %73 : vector<8x1xf32>
    %75 = arith.mulf %70, %70 : vector<8x128xf32>
    %cst_42 = arith.constant dense<0.000000e+00> : vector<8xf32>
    %76 = vector.multi_reduction <add>, %75, %cst_42 [1] : vector<8x128xf32> to vector<8xf32>
    %77 = vector.shape_cast %76 : vector<8xf32> to vector<8x1xf32>
    %cst_43 = arith.constant 3.125000e-02 : f32
    %78 = vector.broadcast %cst_43 : f32 to vector<8x1xf32>
    %79 = arith.mulf %77, %78 : vector<8x1xf32>
    %80 = arith.mulf %74, %74 : vector<8x1xf32>
    %81 = arith.subf %79, %80 : vector<8x1xf32>
    %82 = vector.broadcast %74 : vector<8x1xf32> to vector<8x128xf32>
    %83 = arith.subf %70, %82 : vector<8x128xf32>
    %cst_44 = arith.constant 9.99999974E-6 : f32
    %84 = vector.broadcast %cst_44 : f32 to vector<8x1xf32>
    %85 = arith.addf %81, %84 : vector<8x1xf32>
    %86 = math.rsqrt %85 : vector<8x1xf32>
    %87 = vector.broadcast %86 : vector<8x1xf32> to vector<8x128xf32>
    %88 = arith.mulf %83, %87 : vector<8x128xf32>
    %89 = vector.broadcast %55 : vector<1x128xf32> to vector<8x128xf32>
    %90 = arith.mulf %88, %89 : vector<8x128xf32>
    %91 = vector.broadcast %57 : vector<1x128xf32> to vector<8x128xf32>
    %92 = arith.addf %90, %91 : vector<8x128xf32>
    %93 = arith.truncf %92 : vector<8x128xf32> to vector<8x128xbf16>
    %c0_45 = arith.constant 0 : index
    %c0_46 = arith.constant 0 : index
    %94 = vector.load %arg6[%c0_45, %c0_46] : memref<128x128xbf16, #tpu.memory_space<vmem>>, vector<128x128xbf16>
    %cst_47 = arith.constant dense<0.000000e+00> : vector<8x128xf32>
    %95 = tpu.matmul %93, %94, %cst_47 {dimension_numbers = #tpu.dot_dimension_numbers<[1], [0], [0], [1], [0, 0, 1, 1], [], []>} : vector<8x128xbf16>, vector<128x128xbf16>, vector<8x128xf32> -> vector<8x128xf32>
    %c0_48 = arith.constant 0 : index
    %c0_49 = arith.constant 0 : index
    %96 = vector.load %arg7[%c0_48, %c0_49] : memref<1x128xf32, #tpu.memory_space<vmem>>, vector<1x128xf32>
    %97 = vector.broadcast %96 : vector<1x128xf32> to vector<8x128xf32>
    %98 = arith.addf %95, %97 : vector<8x128xf32>
    %c0_50 = arith.constant 0 : index
    %c0_51 = arith.constant 0 : index
    %99 = vector.load %arg8[%c0_50, %c0_51] : memref<384x128xbf16, #tpu.memory_space<vmem>>, vector<384x128xbf16>
    %c0_52 = arith.constant 0 : index
    %c0_53 = arith.constant 0 : index
    %100 = vector.load %arg9[%c0_52, %c0_53] : memref<1x128xf32, #tpu.memory_space<vmem>>, vector<1x128xf32>
    %c0_54 = arith.constant 0 : index
    %c0_55 = arith.constant 0 : index
    %101 = vector.load %arg10[%c0_54, %c0_55] : memref<1x128xf32, #tpu.memory_space<vmem>>, vector<1x128xf32>
    %c0_56 = arith.constant 0 : index
    %c0_57 = arith.constant 0 : index
    %102 = vector.load %arg11[%c0_56, %c0_57] : memref<1x128xf32, #tpu.memory_space<vmem>>, vector<1x128xf32>
    %c1_i32_58 = arith.constant 1 : i32
    %103 = tpu.dynamic_rotate %98 by %c1_i32_58 dim 0 : vector<8x128xf32>, i32 -> vector<8x128xf32>
    %cst_59 = arith.constant 0.000000e+00 : f32
    %104 = vector.broadcast %cst_59 : f32 to vector<8x128xf32>
    %105 = arith.select %4, %104, %103 : vector<8x128xi1>, vector<8x128xf32>
    %c7_i32_60 = arith.constant 7 : i32
    %106 = tpu.dynamic_rotate %98 by %c7_i32_60 dim 0 : vector<8x128xf32>, i32 -> vector<8x128xf32>
    %cst_61 = arith.constant 0.000000e+00 : f32
    %107 = vector.broadcast %cst_61 : f32 to vector<8x128xf32>
    %108 = arith.select %6, %107, %106 : vector<8x128xi1>, vector<8x128xf32>
    %109 = tpu.concatenate %105, %98, %108 in 1 : vector<8x128xf32>, vector<8x128xf32>, vector<8x128xf32> -> vector<8x384xf32>
    %110 = arith.truncf %109 : vector<8x384xf32> to vector<8x384xbf16>
    %cst_62 = arith.constant dense<0.000000e+00> : vector<8x128xf32>
    %111 = tpu.matmul %110, %99, %cst_62 {dimension_numbers = #tpu.dot_dimension_numbers<[1], [0], [0], [1], [0, 0, 1, 1], [], []>} : vector<8x384xbf16>, vector<384x128xbf16>, vector<8x128xf32> -> vector<8x128xf32>
    %112 = vector.broadcast %100 : vector<1x128xf32> to vector<8x128xf32>
    %113 = arith.addf %111, %112 : vector<8x128xf32>
    %cst_63 = arith.constant 0.000000e+00 : f32
    %114 = vector.broadcast %cst_63 : f32 to vector<8x128xf32>
    %115 = arith.maximumf %113, %114 : vector<8x128xf32>
    %cst_64 = arith.constant dense<0.000000e+00> : vector<8xf32>
    %116 = vector.multi_reduction <add>, %115, %cst_64 [1] : vector<8x128xf32> to vector<8xf32>
    %117 = vector.shape_cast %116 : vector<8xf32> to vector<8x1xf32>
    %cst_65 = arith.constant 3.125000e-02 : f32
    %118 = vector.broadcast %cst_65 : f32 to vector<8x1xf32>
    %119 = arith.mulf %117, %118 : vector<8x1xf32>
    %120 = arith.mulf %115, %115 : vector<8x128xf32>
    %cst_66 = arith.constant dense<0.000000e+00> : vector<8xf32>
    %121 = vector.multi_reduction <add>, %120, %cst_66 [1] : vector<8x128xf32> to vector<8xf32>
    %122 = vector.shape_cast %121 : vector<8xf32> to vector<8x1xf32>
    %cst_67 = arith.constant 3.125000e-02 : f32
    %123 = vector.broadcast %cst_67 : f32 to vector<8x1xf32>
    %124 = arith.mulf %122, %123 : vector<8x1xf32>
    %125 = arith.mulf %119, %119 : vector<8x1xf32>
    %126 = arith.subf %124, %125 : vector<8x1xf32>
    %127 = vector.broadcast %119 : vector<8x1xf32> to vector<8x128xf32>
    %128 = arith.subf %115, %127 : vector<8x128xf32>
    %cst_68 = arith.constant 9.99999974E-6 : f32
    %129 = vector.broadcast %cst_68 : f32 to vector<8x1xf32>
    %130 = arith.addf %126, %129 : vector<8x1xf32>
    %131 = math.rsqrt %130 : vector<8x1xf32>
    %132 = vector.broadcast %131 : vector<8x1xf32> to vector<8x128xf32>
    %133 = arith.mulf %128, %132 : vector<8x128xf32>
    %134 = vector.broadcast %101 : vector<1x128xf32> to vector<8x128xf32>
    %135 = arith.mulf %133, %134 : vector<8x128xf32>
    %136 = vector.broadcast %102 : vector<1x128xf32> to vector<8x128xf32>
    %137 = arith.addf %135, %136 : vector<8x128xf32>
    %c0_69 = arith.constant 0 : index
    %c0_70 = arith.constant 0 : index
    %138 = vector.load %arg12[%c0_69, %c0_70] : memref<1x128xf32, #tpu.memory_space<vmem>>, vector<1x128xf32>
    %139 = vector.broadcast %138 : vector<1x128xf32> to vector<8x128xf32>
    %140 = arith.mulf %137, %139 : vector<8x128xf32>
    %cst_71 = arith.constant dense<0.000000e+00> : vector<8xf32>
    %141 = vector.multi_reduction <add>, %140, %cst_71 [1] : vector<8x128xf32> to vector<8xf32>
    %142 = vector.shape_cast %141 : vector<8xf32> to vector<8x1xf32>
    %c0_72 = arith.constant 0 : index
    %c0_73 = arith.constant 0 : index
    %143 = vector.load %arg13[%c0_72, %c0_73] : memref<1x1xf32, #tpu.memory_space<vmem>>, vector<1x1xf32>
    %144 = vector.broadcast %143 : vector<1x1xf32> to vector<8x1xf32>
    %145 = arith.addf %142, %144 : vector<8x1xf32>
    %c0_74 = arith.constant 0 : index
    %c0_75 = arith.constant 0 : index
    %c0_76 = arith.constant 0 : index
    %146 = vector.load %arg14[%c0_74, %c0_75, %c0_76] : memref<1x8x1xf32, #tpu.memory_space<vmem>>, vector<1x8x1xf32>
    %147 = vector.shape_cast %146 : vector<1x8x1xf32> to vector<8x1xf32>
    %148 = vector.shape_cast %145 : vector<8x1xf32> to vector<1x8x1xf32>
    tpu.vector_store %arg14[%c0_74, %c0_75, %c0_76], %148 {strides = array<i32>} : memref<1x8x1xf32, #tpu.memory_space<vmem>>, vector<1x8x1xf32>,
    return
  }
  func.func @transform_0(%arg0: i32) -> (i32, i32, i32) {
    %c0_i32 = arith.constant 0 : i32
    %c0_i32_0 = arith.constant 0 : i32
    %c0_i32_1 = arith.constant 0 : i32
    return %arg0, %c0_i32, %c0_i32_0 : i32, i32, i32
  }
  func.func @transform_1(%arg0: i32) -> (i32, i32, i32) {
    %c0_i32 = arith.constant 0 : i32
    %c0_i32_0 = arith.constant 0 : i32
    %c0_i32_1 = arith.constant 0 : i32
    %c0_i32_2 = arith.constant 0 : i32
    return %c0_i32, %c0_i32_0, %c0_i32_1 : i32, i32, i32
  }
  func.func @transform_2(%arg0: i32) -> (i32, i32, i32) {
    %c0_i32 = arith.constant 0 : i32
    %c0_i32_0 = arith.constant 0 : i32
    %c0_i32_1 = arith.constant 0 : i32
    %c0_i32_2 = arith.constant 0 : i32
    return %c0_i32, %c0_i32_0, %c0_i32_1 : i32, i32, i32
  }
  func.func @transform_3(%arg0: i32) -> (i32, i32, i32) {
    %c0_i32 = arith.constant 0 : i32
    %c0_i32_0 = arith.constant 0 : i32
    %c0_i32_1 = arith.constant 0 : i32
    %c0_i32_2 = arith.constant 0 : i32
    return %c0_i32, %c0_i32_0, %c0_i32_1 : i32, i32, i32
  }
  func.func @transform_4(%arg0: i32) -> (i32, i32, i32) {
    %c0_i32 = arith.constant 0 : i32
    %c0_i32_0 = arith.constant 0 : i32
    %c0_i32_1 = arith.constant 0 : i32
    %c0_i32_2 = arith.constant 0 : i32
    return %c0_i32, %c0_i32_0, %c0_i32_1 : i32, i32, i32
  }
  func.func @transform_5(%arg0: i32) -> (i32, i32) {
    %c0_i32 = arith.constant 0 : i32
    %c0_i32_0 = arith.constant 0 : i32
    %c0_i32_1 = arith.constant 0 : i32
    return %c0_i32, %c0_i32_0 : i32, i32
  }
  func.func @transform_6(%arg0: i32) -> (i32, i32) {
    %c0_i32 = arith.constant 0 : i32
    %c0_i32_0 = arith.constant 0 : i32
    %c0_i32_1 = arith.constant 0 : i32
    return %c0_i32, %c0_i32_0 : i32, i32
  }
  func.func @transform_7(%arg0: i32) -> (i32, i32) {
    %c0_i32 = arith.constant 0 : i32
    %c0_i32_0 = arith.constant 0 : i32
    %c0_i32_1 = arith.constant 0 : i32
    return %c0_i32, %c0_i32_0 : i32, i32
  }
  func.func @transform_8(%arg0: i32) -> (i32, i32) {
    %c0_i32 = arith.constant 0 : i32
    %c0_i32_0 = arith.constant 0 : i32
    %c0_i32_1 = arith.constant 0 : i32
    return %c0_i32, %c0_i32_0 : i32, i32
  }
  func.func @transform_9(%arg0: i32) -> (i32, i32) {
    %c0_i32 = arith.constant 0 : i32
    %c0_i32_0 = arith.constant 0 : i32
    %c0_i32_1 = arith.constant 0 : i32
    return %c0_i32, %c0_i32_0 : i32, i32
  }
  func.func @transform_10(%arg0: i32) -> (i32, i32) {
    %c0_i32 = arith.constant 0 : i32
    %c0_i32_0 = arith.constant 0 : i32
    %c0_i32_1 = arith.constant 0 : i32
    return %c0_i32, %c0_i32_0 : i32, i32
  }
  func.func @transform_11(%arg0: i32) -> (i32, i32) {
    %c0_i32 = arith.constant 0 : i32
    %c0_i32_0 = arith.constant 0 : i32
    %c0_i32_1 = arith.constant 0 : i32
    return %c0_i32, %c0_i32_0 : i32, i32
  }
  func.func @transform_12(%arg0: i32) -> (i32, i32) {
    %c0_i32 = arith.constant 0 : i32
    %c0_i32_0 = arith.constant 0 : i32
    %c0_i32_1 = arith.constant 0 : i32
    return %c0_i32, %c0_i32_0 : i32, i32
  }
  func.func @transform_13(%arg0: i32) -> (i32, i32, i32) {
    %c0_i32 = arith.constant 0 : i32
    %c0_i32_0 = arith.constant 0 : i32
    %c0_i32_1 = arith.constant 0 : i32
    return %arg0, %c0_i32, %c0_i32_0 : i32, i32, i32
  }
}

</mosaic_0001>

<llo_original>
// kernel: tpu_custom_call.1
$region0: #{tpu_custom_call.1}
  #allocation0 [shape = 'u32[]', space=smem, size = 0x4, offset = 0x4, fixed_abs, tag = 'smem constant byte address 0x4 - core index']
  #allocation1 [shape = 'u32[72,128]{1,0:T(1,128)}', space=vmem, size = 0x9000, scoped, tag = 'internal scratch']
  #allocation2 [shape = 'f32[1,1]{1,0:T(1,128)S(1)}', space=vmem, size = 0x200, scoped, tag = 'scoped memory for tpu_custom_call.1']
  %s0 = inlined_call_operand.hbm [shape: f32[2,8,128], index: 0, kind: input, shape index: {}]
  %s1 = inlined_call_operand.hbm [shape: bf16[2,384,128], index: 1, kind: input, shape index: {}]
  %s2 = inlined_call_operand.vmem [shape: f32[2,1,128], index: 2, kind: input, shape index: {}]
  %s3 = inlined_call_operand.vmem [shape: f32[2,1,128], index: 3, kind: input, shape index: {}]
  %s4 = inlined_call_operand.hbm [shape: f32[2,1,128], index: 4, kind: input, shape index: {}]
  %s5 = inlined_call_operand.hbm [shape: bf16[128,128], index: 5, kind: input, shape index: {}]
  %s6 = inlined_call_operand.vmem [shape: f32[1,128], index: 6, kind: input, shape index: {}]
  %s7 = inlined_call_operand.hbm [shape: bf16[384,128], index: 7, kind: input, shape index: {}]
  %s8 = inlined_call_operand.vmem [shape: f32[1,128], index: 8, kind: input, shape index: {}]
  %s9 = inlined_call_operand.vmem [shape: f32[1,128], index: 9, kind: input, shape index: {}]
  %s10 = inlined_call_operand.vmem [shape: f32[1,128], index: 10, kind: input, shape index: {}]
  %s11 = inlined_call_operand.vmem [shape: f32[1,128], index: 11, kind: input, shape index: {}]
  %s12 = inlined_call_operand.<no memory space> [shape: f32[1,1], index: 12, kind: input, shape index: {}]
  %s13 = inlined_call_operand.vmem [shape: f32[2,8,1], index: 13, kind: output, shape index: {}]
  %s14 = sld [smem:[#allocation0]]
  $region105: #{tpu_custom_call.1} parent=0
    _
  %s16 = ssub.s32 1, %s14
  %s17 = scalar_select 0, %s16, %s14
  %v18 = vstv %s12
  %19 = vst [vmem:[#allocation2] sm:$0x1] %v18
  $region1: #{tpu_custom_call.1} parent=0
    #allocation3 [shape = 'u8[8192]{0}', space=vmem, size = 0x2000, scoped, tag = 'input window, operand 0']
    #allocation4 [shape = 's32[2]{0}', space=sflag, size = 0x8, scoped, tag = 'scoped memory for tpu_custom_call.1']
    #allocation5 [shape = 'u8[196608]{0}', space=vmem, size = 0x30000, scoped, tag = 'input window, operand 1, single buffered']
    #allocation6 [shape = 's32[1]{0}', space=sflag, size = 0x4, scoped, tag = 'scoped memory for tpu_custom_call.1']
    #allocation7 [shape = 'u8[1024]{0}', space=vmem, size = 0x400, scoped, tag = 'input window, operand 4, single buffered']
    #allocation8 [shape = 'u8[32768]{0}', space=vmem, size = 0x8000, scoped, tag = 'input window, operand 5, single buffered']
    #allocation9 [shape = 's32[1]{0}', space=sflag, size = 0x4, scoped, tag = 'scoped memory for tpu_custom_call.1']
    #allocation10 [shape = 'u8[98304]{0}', space=vmem, size = 0x18000, scoped, tag = 'input window, operand 7, single buffered']
    %20 = vsyncpa [#allocation4], 0
    %s21 = scalar_lea.sflag [#allocation4], 1
    %22 = vsyncpa %s21, 0
    %23 = vsyncpa [#allocation6], 0
    %24 = vsyncpa [#allocation9], 0
    loop: start=0, step=1, limit=4
    $region2: #{tpu_custom_call.1} parent=1 // loop_pre_header
      _
    $region3: #{tpu_custom_call.1} parent=1 // loop_header
      %s26 = sphi 0, %s30
      %p27 = scmp.ge.s32.totalorder %s26, 4
      %s36 = sphi 0, %s38
      %s39 = sphi 0, %s36
      %s40 = sphi 0, %s39
      %s56 = sphi 0, %s40
      %s60 = sphi 0, %s60
      %s62 = sphi 0, %s60
      %s63 = sphi 0, %s62
      %s77 = sphi 0, %s63
      %s81 = sphi 0, %s81
      %s83 = sphi 0, %s81
      %s84 = sphi 0, %s83
      %s98 = sphi 0, %s84
      %s102 = sphi 0, %s102
      %s104 = sphi 0, %s102
      %s105 = sphi 0, %s104
      %s119 = sphi 0, %s105
      %s123 = sphi 0, %s123
      %s125 = sphi 0, %s123
      %s126 = sphi 0, %s125
      %s140 = sphi 0, %s126
      %s144 = sphi 0, %s144
      %s146 = sphi 0, %s144
      %s147 = sphi 0, %s146
      %s161 = sphi 0, %s147
      %s165 = sphi 0, %s165
      %s167 = sphi 0, %s165
      %s168 = sphi 0, %s167
      %s182 = sphi 0, %s168
      %s186 = sphi 0, %s186
      %s188 = sphi 0, %s186
      %s189 = sphi 0, %s188
      %s203 = sphi 0, %s189
      %s207 = sphi 0, %s207
      %s209 = sphi 0, %s207
      %s210 = sphi 0, %s209
      %s224 = sphi 0, %s210
      %s228 = sphi 0, %s228
      %s230 = sphi 0, %s228
      %s231 = sphi 0, %s230
      %s245 = sphi 0, %s231
      %s249 = sphi 0, %s249
      %s251 = sphi 0, %s249
      %s252 = sphi 0, %s251
      %s266 = sphi 0, %s252
      %s270 = sphi 0, %s270
      %s272 = sphi 0, %s270
      %s273 = sphi 0, %s272
      %s287 = sphi 0, %s273
      %s291 = sphi 0, %s291
      %s293 = sphi 0, %s291
      %s294 = sphi 0, %s293
      %s308 = sphi 0, %s294
      %s314 = sphi 0, %s316
      %s317 = sphi 0, %s314
      %s318 = sphi 0, %s317
      %s334 = sphi 0, %s318
    $region4: #{tpu_custom_call.1} parent=1 // loop_header_branch
      %29 = sbr.rel (%p27) target = $region8
    $region5: #{tpu_custom_call.1} parent=1 // loop_body
      %s31 = ssub.s32 %s26, 1
      %s32 = ssub.s32 %s26, 2
      %s33 = sadd.s32 %s26, 1
      %s34 = ssub.s32 %s26, %s33
      %p35 = scmp.eq.s32.totalorder %s34, 0
      %s37 = sadd.s32 %s36, 1
      %s38 = scalar_select %p35, %s36, %s37
      %p41 = pneg %p35
      %p42 = scmp.eq.s32.totalorder %s26, 1
      %p43 = por %p41, %p42
      %p44 = scmp.ne.s32.totalorder %s36, %s39
      %p45 = scmp.eq.s32.totalorder %s26, 0
      %p46 = por %p44, %p45
      %p47 = scmp.ne.s32.totalorder %s36, %s39
      %p48 = scmp.eq.s32.totalorder %s31, 1
      %p49 = por %p47, %p48
      %p50 = scmp.ne.s32.totalorder %s39, %s40
      %p51 = scmp.eq.s32.totalorder %s31, 0
      %p52 = por %p50, %p51
      %p53 = scmp.ne.s32.totalorder %s39, %s40
      %p54 = scmp.eq.s32.totalorder %s32, 1
      %p55 = por %p53, %p54
      %p57 = scmp.ne.s32.totalorder %s40, %s56
      %p58 = scmp.eq.s32.totalorder %s32, 0
      %p59 = por %p57, %p58
      %s61 = sadd.s32 %s60, 1
      %p64 = scmp.eq.s32.totalorder %s26, 1
      %p65 = scmp.ne.s32.totalorder %s60, %s62
      %p66 = scmp.eq.s32.totalorder %s26, 0
      %p67 = por %p65, %p66
      %p68 = scmp.ne.s32.totalorder %s60, %s62
      %p69 = scmp.eq.s32.totalorder %s31, 1
      %p70 = por %p68, %p69
      %p71 = scmp.ne.s32.totalorder %s62, %s63
      %p72 = scmp.eq.s32.totalorder %s31, 0
      %p73 = por %p71, %p72
      %p74 = scmp.ne.s32.totalorder %s62, %s63
      %p75 = scmp.eq.s32.totalorder %s32, 1
      %p76 = por %p74, %p75
      %p78 = scmp.ne.s32.totalorder %s63, %s77
      %p79 = scmp.eq.s32.totalorder %s32, 0
      %p80 = por %p78, %p79
      %s82 = sadd.s32 %s81, 1
      %p85 = scmp.eq.s32.totalorder %s26, 1
      %p86 = scmp.ne.s32.totalorder %s81, %s83
      %p87 = scmp.eq.s32.totalorder %s26, 0
      %p88 = por %p86, %p87
      %p89 = scmp.ne.s32.totalorder %s81, %s83
      %p90 = scmp.eq.s32.totalorder %s31, 1
      %p91 = por %p89, %p90
      %p92 = scmp.ne.s32.totalorder %s83, %s84
      %p93 = scmp.eq.s32.totalorder %s31, 0
      %p94 = por %p92, %p93
      %p95 = scmp.ne.s32.totalorder %s83, %s84
      %p96 = scmp.eq.s32.totalorder %s32, 1
      %p97 = por %p95, %p96
      %p99 = scmp.ne.s32.totalorder %s84, %s98
      %p100 = scmp.eq.s32.totalorder %s32, 0
      %p101 = por %p99, %p100
      %s103 = sadd.s32 %s102, 1
      %p106 = scmp.eq.s32.totalorder %s26, 1
      %p107 = scmp.ne.s32.totalorder %s102, %s104
      %p108 = scmp.eq.s32.totalorder %s26, 0
      %p109 = por %p107, %p108
      %p110 = scmp.ne.s32.totalorder %s102, %s104
      %p111 = scmp.eq.s32.totalorder %s31, 1
      %p112 = por %p110, %p111
      %p113 = scmp.ne.s32.totalorder %s104, %s105
      %p114 = scmp.eq.s32.totalorder %s31, 0
      %p115 = por %p113, %p114
      %p116 = scmp.ne.s32.totalorder %s104, %s105
      %p117 = scmp.eq.s32.totalorder %s32, 1
      %p118 = por %p116, %p117
      %p120 = scmp.ne.s32.totalorder %s105, %s119
      %p121 = scmp.eq.s32.totalorder %s32, 0
      %p122 = por %p120, %p121
      %s124 = sadd.s32 %s123, 1
      %p127 = scmp.eq.s32.totalorder %s26, 1
      %p128 = scmp.ne.s32.totalorder %s123, %s125
      %p129 = scmp.eq.s32.totalorder %s26, 0
      %p130 = por %p128, %p129
      %p131 = scmp.ne.s32.totalorder %s123, %s125
      %p132 = scmp.eq.s32.totalorder %s31, 1
      %p133 = por %p131, %p132
      %p134 = scmp.ne.s32.totalorder %s125, %s126
      %p135 = scmp.eq.s32.totalorder %s31, 0
      %p136 = por %p134, %p135
      %p137 = scmp.ne.s32.totalorder %s125, %s126
      %p138 = scmp.eq.s32.totalorder %s32, 1
      %p139 = por %p137, %p138
      %p141 = scmp.ne.s32.totalorder %s126, %s140
      %p142 = scmp.eq.s32.totalorder %s32, 0
      %p143 = por %p141, %p142
      %s145 = sadd.s32 %s144, 1
      %p148 = scmp.eq.s32.totalorder %s26, 1
      %p149 = scmp.ne.s32.totalorder %s144, %s146
      %p150 = scmp.eq.s32.totalorder %s26, 0
      %p151 = por %p149, %p150
      %p152 = scmp.ne.s32.totalorder %s144, %s146
      %p153 = scmp.eq.s32.totalorder %s31, 1
      %p154 = por %p152, %p153
      %p155 = scmp.ne.s32.totalorder %s146, %s147
      %p156 = scmp.eq.s32.totalorder %s31, 0
      %p157 = por %p155, %p156
      %p158 = scmp.ne.s32.totalorder %s146, %s147
      %p159 = scmp.eq.s32.totalorder %s32, 1
      %p160 = por %p158, %p159
      %p162 = scmp.ne.s32.totalorder %s147, %s161
      %p163 = scmp.eq.s32.totalorder %s32, 0
      %p164 = por %p162, %p163
      %s166 = sadd.s32 %s165, 1
      %p169 = scmp.eq.s32.totalorder %s26, 1
      %p170 = scmp.ne.s32.totalorder %s165, %s167
      %p171 = scmp.eq.s32.totalorder %s26, 0
      %p172 = por %p170, %p171
      %p173 = scmp.ne.s32.totalorder %s165, %s167
      %p174 = scmp.eq.s32.totalorder %s31, 1
      %p175 = por %p173, %p174
      %p176 = scmp.ne.s32.totalorder %s167, %s168
      %p177 = scmp.eq.s32.totalorder %s31, 0
      %p178 = por %p176, %p177
      %p179 = scmp.ne.s32.totalorder %s167, %s168
      %p180 = scmp.eq.s32.totalorder %s32, 1
      %p181 = por %p179, %p180
      %p183 = scmp.ne.s32.totalorder %s168, %s182
      %p184 = scmp.eq.s32.totalorder %s32, 0
      %p185 = por %p183, %p184
      %s187 = sadd.s32 %s186, 1
      %p190 = scmp.eq.s32.totalorder %s26, 1
      %p191 = scmp.ne.s32.totalorder %s186, %s188
      %p192 = scmp.eq.s32.totalorder %s26, 0
      %p193 = por %p191, %p192
      %p194 = scmp.ne.s32.totalorder %s186, %s188
      %p195 = scmp.eq.s32.totalorder %s31, 1
      %p196 = por %p194, %p195
      %p197 = scmp.ne.s32.totalorder %s188, %s189
      %p198 = scmp.eq.s32.totalorder %s31, 0
      %p199 = por %p197, %p198
      %p200 = scmp.ne.s32.totalorder %s188, %s189
      %p201 = scmp.eq.s32.totalorder %s32, 1
      %p202 = por %p200, %p201
      %p204 = scmp.ne.s32.totalorder %s189, %s203
      %p205 = scmp.eq.s32.totalorder %s32, 0
      %p206 = por %p204, %p205
      %s208 = sadd.s32 %s207, 1
      %p211 = scmp.eq.s32.totalorder %s26, 1
      %p212 = scmp.ne.s32.totalorder %s207, %s209
      %p213 = scmp.eq.s32.totalorder %s26, 0
      %p214 = por %p212, %p213
      %p215 = scmp.ne.s32.totalorder %s207, %s209
      %p216 = scmp.eq.s32.totalorder %s31, 1
      %p217 = por %p215, %p216
      %p218 = scmp.ne.s32.totalorder %s209, %s210
      %p219 = scmp.eq.s32.totalorder %s31, 0
      %p220 = por %p218, %p219
      %p221 = scmp.ne.s32.totalorder %s209, %s210
      %p222 = scmp.eq.s32.totalorder %s32, 1
      %p223 = por %p221, %p222
      %p225 = scmp.ne.s32.totalorder %s210, %s224
      %p226 = scmp.eq.s32.totalorder %s32, 0
      %p227 = por %p225, %p226
      %s229 = sadd.s32 %s228, 1
      %p232 = scmp.eq.s32.totalorder %s26, 1
      %p233 = scmp.ne.s32.totalorder %s228, %s230
      %p234 = scmp.eq.s32.totalorder %s26, 0
      %p235 = por %p233, %p234
      %p236 = scmp.ne.s32.totalorder %s228, %s230
      %p237 = scmp.eq.s32.totalorder %s31, 1
      %p238 = por %p236, %p237
      %p239 = scmp.ne.s32.totalorder %s230, %s231
      %p240 = scmp.eq.s32.totalorder %s31, 0
      %p241 = por %p239, %p240
      %p242 = scmp.ne.s32.totalorder %s230, %s231
      %p243 = scmp.eq.s32.totalorder %s32, 1
      %p244 = por %p242, %p243
      %p246 = scmp.ne.s32.totalorder %s231, %s245
      %p247 = scmp.eq.s32.totalorder %s32, 0
      %p248 = por %p246, %p247
      %s250 = sadd.s32 %s249, 1
      %p253 = scmp.eq.s32.totalorder %s26, 1
      %p254 = scmp.ne.s32.totalorder %s249, %s251
      %p255 = scmp.eq.s32.totalorder %s26, 0
      %p256 = por %p254, %p255
      %p257 = scmp.ne.s32.totalorder %s249, %s251
      %p258 = scmp.eq.s32.totalorder %s31, 1
      %p259 = por %p257, %p258
      %p260 = scmp.ne.s32.totalorder %s251, %s252
      %p261 = scmp.eq.s32.totalorder %s31, 0
      %p262 = por %p260, %p261
      %p263 = scmp.ne.s32.totalorder %s251, %s252
      %p264 = scmp.eq.s32.totalorder %s32, 1
      %p265 = por %p263, %p264
      %p267 = scmp.ne.s32.totalorder %s252, %s266
      %p268 = scmp.eq.s32.totalorder %s32, 0
      %p269 = por %p267, %p268
      %s271 = sadd.s32 %s270, 1
      %p274 = scmp.eq.s32.totalorder %s26, 1
      %p275 = scmp.ne.s32.totalorder %s270, %s272
      %p276 = scmp.eq.s32.totalorder %s26, 0
      %p277 = por %p275, %p276
      %p278 = scmp.ne.s32.totalorder %s270, %s272
      %p279 = scmp.eq.s32.totalorder %s31, 1
      %p280 = por %p278, %p279
      %p281 = scmp.ne.s32.totalorder %s272, %s273
      %p282 = scmp.eq.s32.totalorder %s31, 0
      %p283 = por %p281, %p282
      %p284 = scmp.ne.s32.totalorder %s272, %s273
      %p285 = scmp.eq.s32.totalorder %s32, 1
      %p286 = por %p284, %p285
      %p288 = scmp.ne.s32.totalorder %s273, %s287
      %p289 = scmp.eq.s32.totalorder %s32, 0
      %p290 = por %p288, %p289
      %s292 = sadd.s32 %s291, 1
      %p295 = scmp.eq.s32.totalorder %s26, 1
      %p296 = scmp.ne.s32.totalorder %s291, %s293
      %p297 = scmp.eq.s32.totalorder %s26, 0
      %p298 = por %p296, %p297
      %p299 = scmp.ne.s32.totalorder %s291, %s293
      %p300 = scmp.eq.s32.totalorder %s31, 1
      %p301 = por %p299, %p300
      %p302 = scmp.ne.s32.totalorder %s293, %s294
      %p303 = scmp.eq.s32.totalorder %s31, 0
      %p304 = por %p302, %p303
      %p305 = scmp.ne.s32.totalorder %s293, %s294
      %p306 = scmp.eq.s32.totalorder %s32, 1
      %p307 = por %p305, %p306
      %p309 = scmp.ne.s32.totalorder %s294, %s308
      %p310 = scmp.eq.s32.totalorder %s32, 0
      %p311 = por %p309, %p310
      %s312 = ssub.s32 %s26, %s33
      %p313 = scmp.eq.s32.totalorder %s312, 0
      %s315 = sadd.s32 %s314, 1
      %s316 = scalar_select %p313, %s314, %s315
      %p319 = pneg %p313
      %p320 = scmp.eq.s32.totalorder %s26, 1
      %p321 = por %p319, %p320
      %p322 = scmp.ne.s32.totalorder %s314, %s317
      %p323 = scmp.eq.s32.totalorder %s26, 0
      %p324 = por %p322, %p323
      %p325 = scmp.ne.s32.totalorder %s314, %s317
      %p326 = scmp.eq.s32.totalorder %s31, 1
      %p327 = por %p325, %p326
      %p328 = scmp.ne.s32.totalorder %s317, %s318
      %p329 = scmp.eq.s32.totalorder %s31, 0
      %p330 = por %p328, %p329
      %p331 = scmp.ne.s32.totalorder %s317, %s318
      %p332 = scmp.eq.s32.totalorder %s32, 1
      %p333 = por %p331, %p332
      %p335 = scmp.ne.s32.totalorder %s318, %s334
      %p336 = scmp.eq.s32.totalorder %s32, 0
      %p337 = por %p335, %p336
      %p338 = scmp.le.s32.totalorder 1, %s26
      %p339 = scmp.lt.s32.totalorder %s26, 3
      %p340 = pnand %p338, %p339
      %p341 = pneg %p340
      // Predicated region
      $region9: #{tpu_custom_call.1} parent=5 // pred_check
        _
      $region10: #{tpu_custom_call.1} parent=5 // pred_check_branch
        %343 = sbr.rel (%p340) target = $region12
      $region11: #{tpu_custom_call.1} parent=5 // pred_region
        %s344 = ssub.s32 %s26, 1
        // Predicated region
        $region13: #{tpu_custom_call.1} parent=11 // pred_check
          %p345 = pneg %p73
        $region14: #{tpu_custom_call.1} parent=11 // pred_check_branch
          %347 = sbr.rel (%p345) target = $region16
        $region15: #{tpu_custom_call.1} parent=11 // pred_region
          %349 = vsyncadd [#allocation6], 0
          %s350 = sshll.u32 %s1, 4
          %s351 = int_to_ptr.hbm [resolvable:$true] %s350
          %s352 = sshll.u32 [#allocation5], 4
          %s353 = int_to_ptr.vmem [resolvable:$true] %s352
          %358 = dma.hbm_to_vmem [thread:$0]  %s351, 6144, %s353, [#allocation6], 64, 64, 4
        $region16: #{tpu_custom_call.1} parent=11 // pred_fallthru
          _
        // Predicated region
        $region17: #{tpu_custom_call.1} parent=11 // pred_check
          %p359 = pneg %p94
        $region18: #{tpu_custom_call.1} parent=11 // pred_check_branch
          %361 = sbr.rel (%p359) target = $region20
        $region19: #{tpu_custom_call.1} parent=11 // pred_region
          _
        $region20: #{tpu_custom_call.1} parent=11 // pred_fallthru
          _
        // Predicated region
        $region21: #{tpu_custom_call.1} parent=11 // pred_check
          %p362 = pneg %p115
        $region22: #{tpu_custom_call.1} parent=11 // pred_check_branch
          %364 = sbr.rel (%p362) target = $region24
        $region23: #{tpu_custom_call.1} parent=11 // pred_region
          _
        $region24: #{tpu_custom_call.1} parent=11 // pred_fallthru
          _
        // Predicated region
        $region25: #{tpu_custom_call.1} parent=11 // pred_check
          %p365 = pneg %p136
        $region26: #{tpu_custom_call.1} parent=11 // pred_check_branch
          %367 = sbr.rel (%p365) target = $region28
        $region27: #{tpu_custom_call.1} parent=11 // pred_region
          %369 = vsyncadd [#allocation6], 0
          %s370 = sshll.u32 %s4, 4
          %s371 = int_to_ptr.hbm [resolvable:$true] %s370
          %s372 = sshll.u32 [#allocation7], 4
          %s373 = int_to_ptr.vmem [resolvable:$true] %s372
          %378 = dma.hbm_to_vmem [thread:$0]  %s371, 32, %s373, [#allocation6], 16, 16, 1
        $region28: #{tpu_custom_call.1} parent=11 // pred_fallthru
          _
        // Predicated region
        $region29: #{tpu_custom_call.1} parent=11 // pred_check
          %p379 = pneg %p157
        $region30: #{tpu_custom_call.1} parent=11 // pred_check_branch
          %381 = sbr.rel (%p379) target = $region32
        $region31: #{tpu_custom_call.1} parent=11 // pred_region
          %383 = vsyncadd [#allocation9], 0
          %s384 = sshll.u32 %s5, 4
          %s385 = int_to_ptr.hbm [resolvable:$true] %s384
          %s386 = sshll.u32 [#allocation8], 4
          %s387 = int_to_ptr.vmem [resolvable:$true] %s386
          %392 = dma.hbm_to_vmem [thread:$0]  %s385, 1024, %s387, [#allocation9], 64, 64, 4
        $region32: #{tpu_custom_call.1} parent=11 // pred_fallthru
          _
        // Predicated region
        $region33: #{tpu_custom_call.1} parent=11 // pred_check
          %p393 = pneg %p178
        $region34: #{tpu_custom_call.1} parent=11 // pred_check_branch
          %395 = sbr.rel (%p393) target = $region36
        $region35: #{tpu_custom_call.1} parent=11 // pred_region
          _
        $region36: #{tpu_custom_call.1} parent=11 // pred_fallthru
          _
        // Predicated region
        $region37: #{tpu_custom_call.1} parent=11 // pred_check
          %p396 = pneg %p199
        $region38: #{tpu_custom_call.1} parent=11 // pred_check_branch
          %398 = sbr.rel (%p396) target = $region40
        $region39: #{tpu_custom_call.1} parent=11 // pred_region
          %400 = vsyncadd [#allocation9], 0
          %s401 = sshll.u32 %s7, 4
          %s402 = int_to_ptr.hbm [resolvable:$true] %s401
          %s403 = sshll.u32 [#allocation10], 4
          %s404 = int_to_ptr.vmem [resolvable:$true] %s403
          %409 = dma.hbm_to_vmem [thread:$0]  %s402, 3072, %s404, [#allocation9], 64, 64, 4
        $region40: #{tpu_custom_call.1} parent=11 // pred_fallthru
          _
        // Predicated region
        $region41: #{tpu_custom_call.1} parent=11 // pred_check
          %p410 = pneg %p220
        $region42: #{tpu_custom_call.1} parent=11 // pred_check_branch
          %412 = sbr.rel (%p410) target = $region44
        $region43: #{tpu_custom_call.1} parent=11 // pred_region
          _
        $region44: #{tpu_custom_call.1} parent=11 // pred_fallthru
          _
        // Predicated region
        $region45: #{tpu_custom_call.1} parent=11 // pred_check
          %p413 = pneg %p241
        $region46: #{tpu_custom_call.1} parent=11 // pred_check_branch
          %415 = sbr.rel (%p413) target = $region48
        $region47: #{tpu_custom_call.1} parent=11 // pred_region
          _
        $region48: #{tpu_custom_call.1} parent=11 // pred_fallthru
          _
        // Predicated region
        $region49: #{tpu_custom_call.1} parent=11 // pred_check
          %p416 = pneg %p262
        $region50: #{tpu_custom_call.1} parent=11 // pred_check_branch
          %418 = sbr.rel (%p416) target = $region52
        $region51: #{tpu_custom_call.1} parent=11 // pred_region
          _
        $region52: #{tpu_custom_call.1} parent=11 // pred_fallthru
          _
        // Predicated region
        $region53: #{tpu_custom_call.1} parent=11 // pred_check
          %p419 = pneg %p283
        $region54: #{tpu_custom_call.1} parent=11 // pred_check_branch
          %421 = sbr.rel (%p419) target = $region56
        $region55: #{tpu_custom_call.1} parent=11 // pred_region
          _
        $region56: #{tpu_custom_call.1} parent=11 // pred_fallthru
          _
        // Predicated region
        $region57: #{tpu_custom_call.1} parent=11 // pred_check
          %p422 = pneg %p304
        $region58: #{tpu_custom_call.1} parent=11 // pred_check_branch
          %424 = sbr.rel (%p422) target = $region60
        $region59: #{tpu_custom_call.1} parent=11 // pred_region
          _
        $region60: #{tpu_custom_call.1} parent=11 // pred_fallthru
          _
      $region12: #{tpu_custom_call.1} parent=5 // pred_fallthru
        _
      %p425 = scmp.lt.s32.totalorder %s26, 2
      // Predicated region
      $region61: #{tpu_custom_call.1} parent=5 // pred_check
        %p426 = pneg %p425
      $region62: #{tpu_custom_call.1} parent=5 // pred_check_branch
        %428 = sbr.rel (%p426) target = $region64
      $region63: #{tpu_custom_call.1} parent=5 // pred_region
        // Predicated region
        $region65: #{tpu_custom_call.1} parent=63 // pred_check
          %p429 = pneg %p46
        $region66: #{tpu_custom_call.1} parent=63 // pred_check_branch
          %431 = sbr.rel (%p429) target = $region68
        $region67: #{tpu_custom_call.1} parent=63 // pred_region
          %s432 = sand.u32 %s36, 1
          %s433 = scalar_lea.sflag [#allocation4], %s432
          %s434 = sand.u32 %s36, 1
          %s435 = smul.addr %s434, 8
          %s436 = scalar_lea.vmem [#allocation3], %s435
          %438 = vsyncadd %s433, 0
          %s439 = smul.addr %s26, 8
          %s440 = scalar_lea.hbm %s0, %s439
          %s442 = sshll.u32 %s440, 4
          %s443 = int_to_ptr.hbm [resolvable:$true] %s442
          %s444 = sshll.u32 %s436, 4
          %s445 = int_to_ptr.vmem [resolvable:$true] %s444
          %447 = dma.hbm_to_vmem [thread:$0]  %s443, 128, %s445, %s433
        $region68: #{tpu_custom_call.1} parent=63 // pred_fallthru
          _
      $region64: #{tpu_custom_call.1} parent=5 // pred_fallthru
        _
      %p448 = scmp.le.s32.totalorder 1, %s26
      %p449 = scmp.lt.s32.totalorder %s26, 3
      %p450 = pnand %p448, %p449
      %p451 = pneg %p450
      // Predicated region
      $region69: #{tpu_custom_call.1} parent=5 // pred_check
        _
      $region70: #{tpu_custom_call.1} parent=5 // pred_check_branch
        %453 = sbr.rel (%p450) target = $region72
      $region71: #{tpu_custom_call.1} parent=5 // pred_region
        %s454 = ssub.s32 %s26, 1
        %s455 = sand.u32 %s39, 1
        %s456 = scalar_lea.sflag [#allocation4], %s455
        %s457 = sand.u32 %s39, 1
        %s458 = smul.addr %s457, 8
        %s459 = scalar_lea.vmem [#allocation3], %s458
        // Predicated region
        $region73: #{tpu_custom_call.1} parent=71 // pred_check
          %p460 = pneg %p52
        $region74: #{tpu_custom_call.1} parent=71 // pred_check_branch
          %462 = sbr.rel (%p460) target = $region76
        $region75: #{tpu_custom_call.1} parent=71 // pred_region
          %464 = dma.done %s456, 128
        $region76: #{tpu_custom_call.1} parent=71 // pred_fallthru
          _
        // Predicated region
        $region77: #{tpu_custom_call.1} parent=71 // pred_check
          %p465 = pneg %p73
        $region78: #{tpu_custom_call.1} parent=71 // pred_check_branch
          %467 = sbr.rel (%p465) target = $region80
        $region79: #{tpu_custom_call.1} parent=71 // pred_region
          %469 = dma.done [#allocation6], 6144
        $region80: #{tpu_custom_call.1} parent=71 // pred_fallthru
          _
        // Predicated region
        $region81: #{tpu_custom_call.1} parent=71 // pred_check
          %p470 = pneg %p136
        $region82: #{tpu_custom_call.1} parent=71 // pred_check_branch
          %472 = sbr.rel (%p470) target = $region84
        $region83: #{tpu_custom_call.1} parent=71 // pred_region
          %474 = dma.done [#allocation6], 32
        $region84: #{tpu_custom_call.1} parent=71 // pred_fallthru
          _
        // Predicated region
        $region85: #{tpu_custom_call.1} parent=71 // pred_check
          %p475 = pneg %p157
        $region86: #{tpu_custom_call.1} parent=71 // pred_check_branch
          %477 = sbr.rel (%p475) target = $region88
        $region87: #{tpu_custom_call.1} parent=71 // pred_region
          %479 = dma.done [#allocation9], 1024
        $region88: #{tpu_custom_call.1} parent=71 // pred_fallthru
          _
        // Predicated region
        $region89: #{tpu_custom_call.1} parent=71 // pred_check
          %p480 = pneg %p199
        $region90: #{tpu_custom_call.1} parent=71 // pred_check_branch
          %482 = sbr.rel (%p480) target = $region92
        $region91: #{tpu_custom_call.1} parent=71 // pred_region
          %484 = dma.done [#allocation9], 3072
        $region92: #{tpu_custom_call.1} parent=71 // pred_fallthru
          _
        %s485 = sand.u32 %s39, 1
        %s486 = scalar_lea.sflag [#allocation4], %s485
        %s487 = sand.u32 %s39, 1
        %s488 = smul.addr %s487, 8
        %s489 = scalar_lea.vmem [#allocation3], %s488
        %p490 = pneg %p52
        %p491 = pneg %p49
        %p492 = pneg %p73
        %p493 = pneg %p70
        %p494 = pneg %p94
        %p495 = pneg %p91
        %p496 = pneg %p115
        %p497 = pneg %p112
        %p498 = pneg %p136
        %p499 = pneg %p133
        %p500 = pneg %p157
        %p501 = pneg %p154
        %p502 = pneg %p178
        %p503 = pneg %p175
        %p504 = pneg %p199
        %p505 = pneg %p196
        %p506 = pneg %p220
        %p507 = pneg %p217
        %p508 = pneg %p241
        %p509 = pneg %p238
        %p510 = pneg %p262
        %p511 = pneg %p259
        %p512 = pneg %p283
        %p513 = pneg %p280
        %p514 = pneg %p304
        %p515 = pneg %p301
        %p516 = pneg %p330
        %p517 = pneg %p327
        %p518 = scmp.lt.s32.totalorder %s31, 1
        %s519 = scalar_select %p518, %s31, 1
        %s520 = smul.addr %s519, 8
        %s521 = scalar_lea.vmem %s13, %s520
        %p522 = scmp.lt.s32.totalorder %s31, 1
        %s523 = scalar_select %p522, %s31, 1
        %s524 = smul.addr %s523, 8
        %s525 = scalar_lea.vmem %s13, %s524
        %v526 = vld [vmem:[%s459] sm:$0xff]
        %v527 = vlaneseq
        %v528 = vshrl.u32 %v527, 7
        %vm529 = vcmp.eq.s32.totalorder %v528, 0
        %vm530 = vcmp.eq.s32.totalorder %v528, 7
        %v531 = vld [vmem:[#allocation5] sm:$0xf]
        %v532 = vld [vmem:[#allocation5 + $0x4] sm:$0xf]
        %v533 = vld [vmem:[#allocation5 + $0x8] sm:$0xf]
        %v534 = vld [vmem:[#allocation5 + $0xc] sm:$0xf]
        %v535 = vld [vmem:[#allocation5 + $0x10] sm:$0xf]
        %v536 = vld [vmem:[#allocation5 + $0x14] sm:$0xf]
        %v537 = vld [vmem:[#allocation5 + $0x18] sm:$0xf]
        %v538 = vld [vmem:[#allocation5 + $0x1c] sm:$0xf]
        %v539 = vld [vmem:[#allocation5 + $0x20] sm:$0xf]
        %v540 = vld [vmem:[#allocation5 + $0x24] sm:$0xf]
        %v541 = vld [vmem:[#allocation5 + $0x28] sm:$0xf]
        %v542 = vld [vmem:[#allocation5 + $0x2c] sm:$0xf]
        %v543 = vld [vmem:[#allocation5 + $0x30] sm:$0xf]
        %v544 = vld [vmem:[#allocation5 + $0x34] sm:$0xf]
        %v545 = vld [vmem:[#allocation5 + $0x38] sm:$0xf]
        %v546 = vld [vmem:[#allocation5 + $0x3c] sm:$0xf]
        %v547 = vld [vmem:[#allocation5 + $0x40] sm:$0xf]
        %v548 = vld [vmem:[#allocation5 + $0x44] sm:$0xf]
        %v549 = vld [vmem:[#allocation5 + $0x48] sm:$0xf]
        %v550 = vld [vmem:[#allocation5 + $0x4c] sm:$0xf]
        %v551 = vld [vmem:[#allocation5 + $0x50] sm:$0xf]
        %v552 = vld [vmem:[#allocation5 + $0x54] sm:$0xf]
        %v553 = vld [vmem:[#allocation5 + $0x58] sm:$0xf]
        %v554 = vld [vmem:[#allocation5 + $0x5c] sm:$0xf]
        %v555 = vld [vmem:[#allocation5 + $0x60] sm:$0xf]
        %v556 = vld [vmem:[#allocation5 + $0x64] sm:$0xf]
        %v557 = vld [vmem:[#allocation5 + $0x68] sm:$0xf]
        %v558 = vld [vmem:[#allocation5 + $0x6c] sm:$0xf]
        %v559 = vld [vmem:[#allocation5 + $0x70] sm:$0xf]
        %v560 = vld [vmem:[#allocation5 + $0x74] sm:$0xf]
        %v561 = vld [vmem:[#allocation5 + $0x78] sm:$0xf]
        %v562 = vld [vmem:[#allocation5 + $0x7c] sm:$0xf]
        %v563 = vld [vmem:[#allocation5 + $0x80] sm:$0xf]
        %v564 = vld [vmem:[#allocation5 + $0x84] sm:$0xf]
        %v565 = vld [vmem:[#allocation5 + $0x88] sm:$0xf]
        %v566 = vld [vmem:[#allocation5 + $0x8c] sm:$0xf]
        %v567 = vld [vmem:[#allocation5 + $0x90] sm:$0xf]
        %v568 = vld [vmem:[#allocation5 + $0x94] sm:$0xf]
        %v569 = vld [vmem:[#allocation5 + $0x98] sm:$0xf]
        %v570 = vld [vmem:[#allocation5 + $0x9c] sm:$0xf]
        %v571 = vld [vmem:[#allocation5 + $0xa0] sm:$0xf]
        %v572 = vld [vmem:[#allocation5 + $0xa4] sm:$0xf]
        %v573 = vld [vmem:[#allocation5 + $0xa8] sm:$0xf]
        %v574 = vld [vmem:[#allocation5 + $0xac] sm:$0xf]
        %v575 = vld [vmem:[#allocation5 + $0xb0] sm:$0xf]
        %v576 = vld [vmem:[#allocation5 + $0xb4] sm:$0xf]
        %v577 = vld [vmem:[#allocation5 + $0xb8] sm:$0xf]
        %v578 = vld [vmem:[#allocation5 + $0xbc] sm:$0xf]
        %v579 = vld [vmem:[%s2] sm:$0x1]
        %v580 = vld [vmem:[%s3] sm:$0x1]
        %v581 = vld [vmem:[#allocation7] sm:$0x1]
        %v582 = vrot.slane %v526, 7
        %v583 = vsel %vm529, 0.0, %v582
        %v584 = vrot.slane %v526, 1
        %v585 = vsel %vm530, 0.0, %v584
        %v586 = vpack.c.bf16 %v583, %v583
        %v587 = vpack.c.bf16 %v526, %v526
        %v588 = vpack.c.bf16 %v585, %v585
        %v590 = vperm.slane %v579, 0
        %v640 = vunpack.c.l.b16 %v531
        %v641 = vunpack.c.l.b16 %v532
        %v642 = vunpack.c.l.b16 %v533
        %v643 = vunpack.c.l.b16 %v534
        %v644 = vunpack.c.l.b16 %v535
        %v645 = vunpack.c.l.b16 %v536
        %v646 = vunpack.c.l.b16 %v537
        %v647 = vunpack.c.l.b16 %v538
        %v648 = vunpack.c.l.b16 %v539
        %v649 = vunpack.c.l.b16 %v540
        %v650 = vunpack.c.l.b16 %v541
        %v651 = vunpack.c.l.b16 %v542
        %v652 = vunpack.c.l.b16 %v543
        %v653 = vunpack.c.l.b16 %v544
        %v654 = vunpack.c.l.b16 %v545
        %v655 = vunpack.c.l.b16 %v546
        %v656 = vunpack.c.l.b16 %v547
        %v657 = vunpack.c.l.b16 %v548
        %v658 = vunpack.c.l.b16 %v549
        %v659 = vunpack.c.l.b16 %v550
        %v660 = vunpack.c.l.b16 %v551
        %v661 = vunpack.c.l.b16 %v552
        %v662 = vunpack.c.l.b16 %v553
        %v663 = vunpack.c.l.b16 %v554
        %v664 = vunpack.c.l.b16 %v555
        %v665 = vunpack.c.l.b16 %v556
        %v666 = vunpack.c.l.b16 %v557
        %v667 = vunpack.c.l.b16 %v558
        %v668 = vunpack.c.l.b16 %v559
        %v669 = vunpack.c.l.b16 %v560
        %v670 = vunpack.c.l.b16 %v561
        %v671 = vunpack.c.l.b16 %v562
        %v672 = vunpack.c.l.b16 %v563
        %v673 = vunpack.c.l.b16 %v564
        %v674 = vunpack.c.l.b16 %v565
        %v675 = vunpack.c.l.b16 %v566
        %v676 = vunpack.c.l.b16 %v567
        %v677 = vunpack.c.l.b16 %v568
        %v678 = vunpack.c.l.b16 %v569
        %v679 = vunpack.c.l.b16 %v570
        %v680 = vunpack.c.l.b16 %v571
        %v681 = vunpack.c.l.b16 %v572
        %v682 = vunpack.c.l.b16 %v573
        %v683 = vunpack.c.l.b16 %v574
        %v684 = vunpack.c.l.b16 %v575
        %v685 = vunpack.c.l.b16 %v576
        %v686 = vunpack.c.l.b16 %v577
        %v687 = vunpack.c.l.b16 %v578
        %v688 = vpack.c.b16 %v641, %v640
        %v689 = vpack.c.b16 %v643, %v642
        %v690 = vpack.c.b16 %v645, %v644
        %v691 = vpack.c.b16 %v647, %v646
        %v692 = vpack.c.b16 %v649, %v648
        %v693 = vpack.c.b16 %v651, %v650
        %v694 = vpack.c.b16 %v653, %v652
        %v695 = vpack.c.b16 %v655, %v654
        %v696 = vpack.c.b16 %v657, %v656
        %v697 = vpack.c.b16 %v659, %v658
        %v698 = vpack.c.b16 %v661, %v660
        %v699 = vpack.c.b16 %v663, %v662
        %v700 = vpack.c.b16 %v665, %v664
        %v701 = vpack.c.b16 %v667, %v666
        %v702 = vpack.c.b16 %v669, %v668
        %v703 = vpack.c.b16 %v671, %v670
        %v704 = vpack.c.b16 %v673, %v672
        %v705 = vpack.c.b16 %v675, %v674
        %v706 = vpack.c.b16 %v677, %v676
        %v707 = vpack.c.b16 %v679, %v678
        %v708 = vpack.c.b16 %v681, %v680
        %v709 = vpack.c.b16 %v683, %v682
        %v710 = vpack.c.b16 %v685, %v684
        %v711 = vpack.c.b16 %v687, %v686
        %736 = vmatpush.bf16.msra.mxu0 %v695
        %737 = vmatpush.bf16.msra.mxu0 %v694
        %738 = vmatpush.bf16.msra.mxu0 %v693
        %739 = vmatpush.bf16.msra.mxu0 %v692
        %740 = vmatpush.bf16.msra.mxu0 %v691
        %741 = vmatpush.bf16.msra.mxu0 %v690
        %742 = vmatpush.bf16.msra.mxu0 %v689
        %743 = vmatpush.bf16.msra.mxu0 %v688
        %744 = vmatmul.bf16.gmra.mxu0 %v586
        %v745 = vpop.f32.mrf.mxu0
        %v746 = vadd.f32 %v590, %v745
        %v747 = vpop.f32.mrf.mxu0
        %748 = vdwg.mxu0
        %749 = vmatpush.bf16.msra.mxu0 %v703
        %750 = vmatpush.bf16.msra.mxu0 %v702
        %751 = vmatpush.bf16.msra.mxu0 %v701
        %752 = vmatpush.bf16.msra.mxu0 %v700
        %753 = vmatpush.bf16.msra.mxu0 %v699
        %754 = vmatpush.bf16.msra.mxu0 %v698
        %755 = vmatpush.bf16.msra.mxu0 %v697
        %756 = vmatpush.bf16.msra.mxu0 %v696
        %757 = vmatmul.bf16.gmra.mxu0 %v587
        %v758 = vpop.f32.mrf.mxu0
        %v759 = vadd.f32 %v746, %v758
        %v760 = vpop.f32.mrf.mxu0
        %761 = vdwg.mxu0
        %762 = vmatpush.bf16.msra.mxu0 %v711
        %763 = vmatpush.bf16.msra.mxu0 %v710
        %764 = vmatpush.bf16.msra.mxu0 %v709
        %765 = vmatpush.bf16.msra.mxu0 %v708
        %766 = vmatpush.bf16.msra.mxu0 %v707
        %767 = vmatpush.bf16.msra.mxu0 %v706
        %768 = vmatpush.bf16.msra.mxu0 %v705
        %769 = vmatpush.bf16.msra.mxu0 %v704
        %770 = vmatmul.bf16.gmra.mxu0 %v588
        %v771 = vpop.f32.mrf.mxu0
        %v772 = vadd.f32 %v759, %v771
        %v773 = vpop.f32.mrf.mxu0
        %774 = vdwg.mxu0
        %v775 = vmax.f32 %v772, 0.0
        %776 = vadd.xlane.f32.xlu0 %v775
        %v777 = vpop.xlane.xlu0 %776
        %v778 = vmul.f32 %v777, 0.03125
        %v779 = vmul.f32 %v775, %v775
        %780 = vadd.xlane.f32.xlu0 %v779
        %v781 = vpop.xlane.xlu0 %780
        %v782 = vmul.f32 %v781, 0.03125
        %v783 = vmul.f32 %v778, %v778
        %v784 = vsub.f32 %v782, %v783
        %v785 = vsub.f32 %v775, %v778
        %v786 = vadd.f32 %v784, 1e-05
        %v787 = vrsqrt.pop %v786
        %v788 = vmul.f32 %v787, %v786
        %v789 = vmul.f32 %v788, %v787
        %v790 = vmul.f32 0.5, %v789
        %v791 = vsub.f32 1.5, %v790
        %v792 = vmul.f32 %v787, %v791
        %vm793 = vweird.f32 %v786
        %vm794 = vweird.f32 %v787
        %vm795 = vmor %vm793, %vm794
        %v796 = vsel %vm795, %v787, %v792
        %v797 = vmul.f32 %v785, %v796
        %v799 = vperm.slane %v580, 0
        %v801 = vmul.f32 %v797, %v799
        %v803 = vperm.slane %v581, 0
        %v805 = vadd.f32 %v801, %v803
        %s806 = scalar_lea.vmem [#allocation5], 192
        %v807 = vld [vmem:[%s806] sm:$0xf]
        %v808 = vld [vmem:[%s806 + $0x4] sm:$0xf]
        %v809 = vld [vmem:[%s806 + $0x8] sm:$0xf]
        %v810 = vld [vmem:[%s806 + $0xc] sm:$0xf]
        %v811 = vld [vmem:[%s806 + $0x10] sm:$0xf]
        %v812 = vld [vmem:[%s806 + $0x14] sm:$0xf]
        %v813 = vld [vmem:[%s806 + $0x18] sm:$0xf]
        %v814 = vld [vmem:[%s806 + $0x1c] sm:$0xf]
        %v815 = vld [vmem:[%s806 + $0x20] sm:$0xf]
        %v816 = vld [vmem:[%s806 + $0x24] sm:$0xf]
        %v817 = vld [vmem:[%s806 + $0x28] sm:$0xf]
        %v818 = vld [vmem:[%s806 + $0x2c] sm:$0xf]
        %v819 = vld [vmem:[%s806 + $0x30] sm:$0xf]
        %v820 = vld [vmem:[%s806 + $0x34] sm:$0xf]
        %v821 = vld [vmem:[%s806 + $0x38] sm:$0xf]
        %v822 = vld [vmem:[%s806 + $0x3c] sm:$0xf]
        %v823 = vld [vmem:[%s806 + $0x40] sm:$0xf]
        %v824 = vld [vmem:[%s806 + $0x44] sm:$0xf]
        %v825 = vld [vmem:[%s806 + $0x48] sm:$0xf]
        %v826 = vld [vmem:[%s806 + $0x4c] sm:$0xf]
        %v827 = vld [vmem:[%s806 + $0x50] sm:$0xf]
        %v828 = vld [vmem:[%s806 + $0x54] sm:$0xf]
        %v829 = vld [vmem:[%s806 + $0x58] sm:$0xf]
        %v830 = vld [vmem:[%s806 + $0x5c] sm:$0xf]
        %v831 = vld [vmem:[%s806 + $0x60] sm:$0xf]
        %v832 = vld [vmem:[%s806 + $0x64] sm:$0xf]
        %v833 = vld [vmem:[%s806 + $0x68] sm:$0xf]
        %v834 = vld [vmem:[%s806 + $0x6c] sm:$0xf]
        %v835 = vld [vmem:[%s806 + $0x70] sm:$0xf]
        %v836 = vld [vmem:[%s806 + $0x74] sm:$0xf]
        %v837 = vld [vmem:[%s806 + $0x78] sm:$0xf]
        %v838 = vld [vmem:[%s806 + $0x7c] sm:$0xf]
        %v839 = vld [vmem:[%s806 + $0x80] sm:$0xf]
        %v840 = vld [vmem:[%s806 + $0x84] sm:$0xf]
        %v841 = vld [vmem:[%s806 + $0x88] sm:$0xf]
        %v842 = vld [vmem:[%s806 + $0x8c] sm:$0xf]
        %v843 = vld [vmem:[%s806 + $0x90] sm:$0xf]
        %v844 = vld [vmem:[%s806 + $0x94] sm:$0xf]
        %v845 = vld [vmem:[%s806 + $0x98] sm:$0xf]
        %v846 = vld [vmem:[%s806 + $0x9c] sm:$0xf]
        %v847 = vld [vmem:[%s806 + $0xa0] sm:$0xf]
        %v848 = vld [vmem:[%s806 + $0xa4] sm:$0xf]
        %v849 = vld [vmem:[%s806 + $0xa8] sm:$0xf]
        %v850 = vld [vmem:[%s806 + $0xac] sm:$0xf]
        %v851 = vld [vmem:[%s806 + $0xb0] sm:$0xf]
        %v852 = vld [vmem:[%s806 + $0xb4] sm:$0xf]
        %v853 = vld [vmem:[%s806 + $0xb8] sm:$0xf]
        %v854 = vld [vmem:[%s806 + $0xbc] sm:$0xf]
        %s855 = scalar_lea.vmem %s2, 1
        %v856 = vld [vmem:[%s855] sm:$0x1]
        %s857 = scalar_lea.vmem %s3, 1
        %v858 = vld [vmem:[%s857] sm:$0x1]
        %s859 = scalar_lea.vmem [#allocation7], 1
        %v860 = vld [vmem:[%s859] sm:$0x1]
        %v861 = vrot.slane %v805, 7
        %v862 = vsel %vm529, 0.0, %v861
        %v863 = vrot.slane %v805, 1
        %v864 = vsel %vm530, 0.0, %v863
        %v865 = vpack.c.bf16 %v862, %v862
        %v866 = vpack.c.bf16 %v805, %v805
        %v867 = vpack.c.bf16 %v864, %v864
        %v869 = vperm.slane %v856, 0
        %v919 = vunpack.c.l.b16 %v807
        %v920 = vunpack.c.l.b16 %v808
        %v921 = vunpack.c.l.b16 %v809
        %v922 = vunpack.c.l.b16 %v810
        %v923 = vunpack.c.l.b16 %v811
        %v924 = vunpack.c.l.b16 %v812
        %v925 = vunpack.c.l.b16 %v813
        %v926 = vunpack.c.l.b16 %v814
        %v927 = vunpack.c.l.b16 %v815
        %v928 = vunpack.c.l.b16 %v816
        %v929 = vunpack.c.l.b16 %v817
        %v930 = vunpack.c.l.b16 %v818
        %v931 = vunpack.c.l.b16 %v819
        %v932 = vunpack.c.l.b16 %v820
        %v933 = vunpack.c.l.b16 %v821
        %v934 = vunpack.c.l.b16 %v822
        %v935 = vunpack.c.l.b16 %v823
        %v936 = vunpack.c.l.b16 %v824
        %v937 = vunpack.c.l.b16 %v825
        %v938 = vunpack.c.l.b16 %v826
        %v939 = vunpack.c.l.b16 %v827
        %v940 = vunpack.c.l.b16 %v828
        %v941 = vunpack.c.l.b16 %v829
        %v942 = vunpack.c.l.b16 %v830
        %v943 = vunpack.c.l.b16 %v831
        %v944 = vunpack.c.l.b16 %v832
        %v945 = vunpack.c.l.b16 %v833
        %v946 = vunpack.c.l.b16 %v834
        %v947 = vunpack.c.l.b16 %v835
        %v948 = vunpack.c.l.b16 %v836
        %v949 = vunpack.c.l.b16 %v837
        %v950 = vunpack.c.l.b16 %v838
        %v951 = vunpack.c.l.b16 %v839
        %v952 = vunpack.c.l.b16 %v840
        %v953 = vunpack.c.l.b16 %v841
        %v954 = vunpack.c.l.b16 %v842
        %v955 = vunpack.c.l.b16 %v843
        %v956 = vunpack.c.l.b16 %v844
        %v957 = vunpack.c.l.b16 %v845
        %v958 = vunpack.c.l.b16 %v846
        %v959 = vunpack.c.l.b16 %v847
        %v960 = vunpack.c.l.b16 %v848
        %v961 = vunpack.c.l.b16 %v849
        %v962 = vunpack.c.l.b16 %v850
        %v963 = vunpack.c.l.b16 %v851
        %v964 = vunpack.c.l.b16 %v852
        %v965 = vunpack.c.l.b16 %v853
        %v966 = vunpack.c.l.b16 %v854
        %v967 = vpack.c.b16 %v920, %v919
        %v968 = vpack.c.b16 %v922, %v921
        %v969 = vpack.c.b16 %v924, %v923
        %v970 = vpack.c.b16 %v926, %v925
        %v971 = vpack.c.b16 %v928, %v927
        %v972 = vpack.c.b16 %v930, %v929
        %v973 = vpack.c.b16 %v932, %v931
        %v974 = vpack.c.b16 %v934, %v933
        %v975 = vpack.c.b16 %v936, %v935
        %v976 = vpack.c.b16 %v938, %v937
        %v977 = vpack.c.b16 %v940, %v939
        %v978 = vpack.c.b16 %v942, %v941
        %v979 = vpack.c.b16 %v944, %v943
        %v980 = vpack.c.b16 %v946, %v945
        %v981 = vpack.c.b16 %v948, %v947
        %v982 = vpack.c.b16 %v950, %v949
        %v983 = vpack.c.b16 %v952, %v951
        %v984 = vpack.c.b16 %v954, %v953
        %v985 = vpack.c.b16 %v956, %v955
        %v986 = vpack.c.b16 %v958, %v957
        %v987 = vpack.c.b16 %v960, %v959
        %v988 = vpack.c.b16 %v962, %v961
        %v989 = vpack.c.b16 %v964, %v963
        %v990 = vpack.c.b16 %v966, %v965
        %1015 = vmatpush.bf16.msra.mxu0 %v974
        %1016 = vmatpush.bf16.msra.mxu0 %v973
        %1017 = vmatpush.bf16.msra.mxu0 %v972
        %1018 = vmatpush.bf16.msra.mxu0 %v971
        %1019 = vmatpush.bf16.msra.mxu0 %v970
        %1020 = vmatpush.bf16.msra.mxu0 %v969
        %1021 = vmatpush.bf16.msra.mxu0 %v968
        %1022 = vmatpush.bf16.msra.mxu0 %v967
        %1023 = vmatmul.bf16.gmra.mxu0 %v865
        %v1024 = vpop.f32.mrf.mxu0
        %v1025 = vadd.f32 %v869, %v1024
        %v1026 = vpop.f32.mrf.mxu0
        %1027 = vdwg.mxu0
        %1028 = vmatpush.bf16.msra.mxu0 %v982
        %1029 = vmatpush.bf16.msra.mxu0 %v981
        %1030 = vmatpush.bf16.msra.mxu0 %v980
        %1031 = vmatpush.bf16.msra.mxu0 %v979
        %1032 = vmatpush.bf16.msra.mxu0 %v978
        %1033 = vmatpush.bf16.msra.mxu0 %v977
        %1034 = vmatpush.bf16.msra.mxu0 %v976
        %1035 = vmatpush.bf16.msra.mxu0 %v975
        %1036 = vmatmul.bf16.gmra.mxu0 %v866
        %v1037 = vpop.f32.mrf.mxu0
        %v1038 = vadd.f32 %v1025, %v1037
        %v1039 = vpop.f32.mrf.mxu0
        %1040 = vdwg.mxu0
        %1041 = vmatpush.bf16.msra.mxu0 %v990
        %1042 = vmatpush.bf16.msra.mxu0 %v989
        %1043 = vmatpush.bf16.msra.mxu0 %v988
        %1044 = vmatpush.bf16.msra.mxu0 %v987
        %1045 = vmatpush.bf16.msra.mxu0 %v986
        %1046 = vmatpush.bf16.msra.mxu0 %v985
        %1047 = vmatpush.bf16.msra.mxu0 %v984
        %1048 = vmatpush.bf16.msra.mxu0 %v983
        %1049 = vmatmul.bf16.gmra.mxu0 %v867
        %v1050 = vpop.f32.mrf.mxu0
        %v1051 = vadd.f32 %v1038, %v1050
        %v1052 = vpop.f32.mrf.mxu0
        %1053 = vdwg.mxu0
        %v1054 = vmax.f32 %v1051, 0.0
        %1055 = vadd.xlane.f32.xlu0 %v1054
        %v1056 = vpop.xlane.xlu0 %1055
        %v1057 = vmul.f32 %v1056, 0.03125
        %v1058 = vmul.f32 %v1054, %v1054
        %1059 = vadd.xlane.f32.xlu0 %v1058
        %v1060 = vpop.xlane.xlu0 %1059
        %v1061 = vmul.f32 %v1060, 0.03125
        %v1062 = vmul.f32 %v1057, %v1057
        %v1063 = vsub.f32 %v1061, %v1062
        %v1064 = vsub.f32 %v1054, %v1057
        %v1065 = vadd.f32 %v1063, 1e-05
        %v1066 = vrsqrt.pop %v1065
        %v1067 = vmul.f32 %v1066, %v1065
        %v1068 = vmul.f32 %v1067, %v1066
        %v1069 = vmul.f32 0.5, %v1068
        %v1070 = vsub.f32 1.5, %v1069
        %v1071 = vmul.f32 %v1066, %v1070
        %vm1072 = vweird.f32 %v1065
        %vm1073 = vweird.f32 %v1066
        %vm1074 = vmor %vm1072, %vm1073
        %v1075 = vsel %vm1074, %v1066, %v1071
        %v1076 = vmul.f32 %v1064, %v1075
        %v1078 = vperm.slane %v858, 0
        %v1080 = vmul.f32 %v1076, %v1078
        %v1082 = vperm.slane %v860, 0
        %v1084 = vadd.f32 %v1080, %v1082
        %v1085 = vpack.c.bf16 %v1084, %v1084
        %v1086 = vld [vmem:[#allocation8] sm:$0xf]
        %v1087 = vld [vmem:[#allocation8 + $0x4] sm:$0xf]
        %v1088 = vld [vmem:[#allocation8 + $0x8] sm:$0xf]
        %v1089 = vld [vmem:[#allocation8 + $0xc] sm:$0xf]
        %v1090 = vld [vmem:[#allocation8 + $0x10] sm:$0xf]
        %v1091 = vld [vmem:[#allocation8 + $0x14] sm:$0xf]
        %v1092 = vld [vmem:[#allocation8 + $0x18] sm:$0xf]
        %v1093 = vld [vmem:[#allocation8 + $0x1c] sm:$0xf]
        %v1094 = vld [vmem:[#allocation8 + $0x20] sm:$0xf]
        %v1095 = vld [vmem:[#allocation8 + $0x24] sm:$0xf]
        %v1096 = vld [vmem:[#allocation8 + $0x28] sm:$0xf]
        %v1097 = vld [vmem:[#allocation8 + $0x2c] sm:$0xf]
        %v1098 = vld [vmem:[#allocation8 + $0x30] sm:$0xf]
        %v1099 = vld [vmem:[#allocation8 + $0x34] sm:$0xf]
        %v1100 = vld [vmem:[#allocation8 + $0x38] sm:$0xf]
        %v1101 = vld [vmem:[#allocation8 + $0x3c] sm:$0xf]
        %v1102 = vld [vmem:[%s6] sm:$0x1]
        %v1104 = vperm.slane %v1102, 0
        %v1122 = vunpack.c.l.b16 %v1086
        %v1123 = vunpack.c.l.b16 %v1087
        %v1124 = vunpack.c.l.b16 %v1088
        %v1125 = vunpack.c.l.b16 %v1089
        %v1126 = vunpack.c.l.b16 %v1090
        %v1127 = vunpack.c.l.b16 %v1091
        %v1128 = vunpack.c.l.b16 %v1092
        %v1129 = vunpack.c.l.b16 %v1093
        %v1130 = vunpack.c.l.b16 %v1094
        %v1131 = vunpack.c.l.b16 %v1095
        %v1132 = vunpack.c.l.b16 %v1096
        %v1133 = vunpack.c.l.b16 %v1097
        %v1134 = vunpack.c.l.b16 %v1098
        %v1135 = vunpack.c.l.b16 %v1099
        %v1136 = vunpack.c.l.b16 %v1100
        %v1137 = vunpack.c.l.b16 %v1101
        %v1138 = vpack.c.b16 %v1123, %v1122
        %v1139 = vpack.c.b16 %v1125, %v1124
        %v1140 = vpack.c.b16 %v1127, %v1126
        %v1141 = vpack.c.b16 %v1129, %v1128
        %v1142 = vpack.c.b16 %v1131, %v1130
        %v1143 = vpack.c.b16 %v1133, %v1132
        %v1144 = vpack.c.b16 %v1135, %v1134
        %v1145 = vpack.c.b16 %v1137, %v1136
        %1154 = vmatpush.bf16.msra.mxu0 %v1145
        %1155 = vmatpush.bf16.msra.mxu0 %v1144
        %1156 = vmatpush.bf16.msra.mxu0 %v1143
        %1157 = vmatpush.bf16.msra.mxu0 %v1142
        %1158 = vmatpush.bf16.msra.mxu0 %v1141
        %1159 = vmatpush.bf16.msra.mxu0 %v1140
        %1160 = vmatpush.bf16.msra.mxu0 %v1139
        %1161 = vmatpush.bf16.msra.mxu0 %v1138
        %1162 = vmatmul.bf16.gmra.mxu0 %v1085
        %v1163 = vpop.f32.mrf.mxu0
        %v1164 = vadd.f32 %v1104, %v1163
        %v1165 = vpop.f32.mrf.mxu0
        %1166 = vdwg.mxu0
        %v1167 = vld [vmem:[#allocation10] sm:$0xf]
        %v1168 = vld [vmem:[#allocation10 + $0x4] sm:$0xf]
        %v1169 = vld [vmem:[#allocation10 + $0x8] sm:$0xf]
        %v1170 = vld [vmem:[#allocation10 + $0xc] sm:$0xf]
        %v1171 = vld [vmem:[#allocation10 + $0x10] sm:$0xf]
        %v1172 = vld [vmem:[#allocation10 + $0x14] sm:$0xf]
        %v1173 = vld [vmem:[#allocation10 + $0x18] sm:$0xf]
        %v1174 = vld [vmem:[#allocation10 + $0x1c] sm:$0xf]
        %v1175 = vld [vmem:[#allocation10 + $0x20] sm:$0xf]
        %v1176 = vld [vmem:[#allocation10 + $0x24] sm:$0xf]
        %v1177 = vld [vmem:[#allocation10 + $0x28] sm:$0xf]
        %v1178 = vld [vmem:[#allocation10 + $0x2c] sm:$0xf]
        %v1179 = vld [vmem:[#allocation10 + $0x30] sm:$0xf]
        %v1180 = vld [vmem:[#allocation10 + $0x34] sm:$0xf]
        %v1181 = vld [vmem:[#allocation10 + $0x38] sm:$0xf]
        %v1182 = vld [vmem:[#allocation10 + $0x3c] sm:$0xf]
        %v1183 = vld [vmem:[#allocation10 + $0x40] sm:$0xf]
        %v1184 = vld [vmem:[#allocation10 + $0x44] sm:$0xf]
        %v1185 = vld [vmem:[#allocation10 + $0x48] sm:$0xf]
        %v1186 = vld [vmem:[#allocation10 + $0x4c] sm:$0xf]
        %v1187 = vld [vmem:[#allocation10 + $0x50] sm:$0xf]
        %v1188 = vld [vmem:[#allocation10 + $0x54] sm:$0xf]
        %v1189 = vld [vmem:[#allocation10 + $0x58] sm:$0xf]
        %v1190 = vld [vmem:[#allocation10 + $0x5c] sm:$0xf]
        %v1191 = vld [vmem:[#allocation10 + $0x60] sm:$0xf]
        %v1192 = vld [vmem:[#allocation10 + $0x64] sm:$0xf]
        %v1193 = vld [vmem:[#allocation10 + $0x68] sm:$0xf]
        %v1194 = vld [vmem:[#allocation10 + $0x6c] sm:$0xf]
        %v1195 = vld [vmem:[#allocation10 + $0x70] sm:$0xf]
        %v1196 = vld [vmem:[#allocation10 + $0x74] sm:$0xf]
        %v1197 = vld [vmem:[#allocation10 + $0x78] sm:$0xf]
        %v1198 = vld [vmem:[#allocation10 + $0x7c] sm:$0xf]
        %v1199 = vld [vmem:[#allocation10 + $0x80] sm:$0xf]
        %v1200 = vld [vmem:[#allocation10 + $0x84] sm:$0xf]
        %v1201 = vld [vmem:[#allocation10 + $0x88] sm:$0xf]
        %v1202 = vld [vmem:[#allocation10 + $0x8c] sm:$0xf]
        %v1203 = vld [vmem:[#allocation10 + $0x90] sm:$0xf]
        %v1204 = vld [vmem:[#allocation10 + $0x94] sm:$0xf]
        %v1205 = vld [vmem:[#allocation10 + $0x98] sm:$0xf]
        %v1206 = vld [vmem:[#allocation10 + $0x9c] sm:$0xf]
        %v1207 = vld [vmem:[#allocation10 + $0xa0] sm:$0xf]
        %v1208 = vld [vmem:[#allocation10 + $0xa4] sm:$0xf]
        %v1209 = vld [vmem:[#allocation10 + $0xa8] sm:$0xf]
        %v1210 = vld [vmem:[#allocation10 + $0xac] sm:$0xf]
        %v1211 = vld [vmem:[#allocation10 + $0xb0] sm:$0xf]
        %v1212 = vld [vmem:[#allocation10 + $0xb4] sm:$0xf]
        %v1213 = vld [vmem:[#allocation10 + $0xb8] sm:$0xf]
        %v1214 = vld [vmem:[#allocation10 + $0xbc] sm:$0xf]
        %v1215 = vld [vmem:[%s8] sm:$0x1]
        %v1216 = vld [vmem:[%s9] sm:$0x1]
        %v1217 = vld [vmem:[%s10] sm:$0x1]
        %v1218 = vrot.slane %v1164, 7
        %v1219 = vsel %vm529, 0.0, %v1218
        %v1220 = vrot.slane %v1164, 1
        %v1221 = vsel %vm530, 0.0, %v1220
        %v1222 = vpack.c.bf16 %v1219, %v1219
        %v1223 = vpack.c.bf16 %v1164, %v1164
        %v1224 = vpack.c.bf16 %v1221, %v1221
        %v1226 = vperm.slane %v1215, 0
        %v1276 = vunpack.c.l.b16 %v1167
        %v1277 = vunpack.c.l.b16 %v1168
        %v1278 = vunpack.c.l.b16 %v1169
        %v1279 = vunpack.c.l.b16 %v1170
        %v1280 = vunpack.c.l.b16 %v1171
        %v1281 = vunpack.c.l.b16 %v1172
        %v1282 = vunpack.c.l.b16 %v1173
        %v1283 = vunpack.c.l.b16 %v1174
        %v1284 = vunpack.c.l.b16 %v1175
        %v1285 = vunpack.c.l.b16 %v1176
        %v1286 = vunpack.c.l.b16 %v1177
        %v1287 = vunpack.c.l.b16 %v1178
        %v1288 = vunpack.c.l.b16 %v1179
        %v1289 = vunpack.c.l.b16 %v1180
        %v1290 = vunpack.c.l.b16 %v1181
        %v1291 = vunpack.c.l.b16 %v1182
        %v1292 = vunpack.c.l.b16 %v1183
        %v1293 = vunpack.c.l.b16 %v1184
        %v1294 = vunpack.c.l.b16 %v1185
        %v1295 = vunpack.c.l.b16 %v1186
        %v1296 = vunpack.c.l.b16 %v1187
        %v1297 = vunpack.c.l.b16 %v1188
        %v1298 = vunpack.c.l.b16 %v1189
        %v1299 = vunpack.c.l.b16 %v1190
        %v1300 = vunpack.c.l.b16 %v1191
        %v1301 = vunpack.c.l.b16 %v1192
        %v1302 = vunpack.c.l.b16 %v1193
        %v1303 = vunpack.c.l.b16 %v1194
        %v1304 = vunpack.c.l.b16 %v1195
        %v1305 = vunpack.c.l.b16 %v1196
        %v1306 = vunpack.c.l.b16 %v1197
        %v1307 = vunpack.c.l.b16 %v1198
        %v1308 = vunpack.c.l.b16 %v1199
        %v1309 = vunpack.c.l.b16 %v1200
        %v1310 = vunpack.c.l.b16 %v1201
        %v1311 = vunpack.c.l.b16 %v1202
        %v1312 = vunpack.c.l.b16 %v1203
        %v1313 = vunpack.c.l.b16 %v1204
        %v1314 = vunpack.c.l.b16 %v1205
        %v1315 = vunpack.c.l.b16 %v1206
        %v1316 = vunpack.c.l.b16 %v1207
        %v1317 = vunpack.c.l.b16 %v1208
        %v1318 = vunpack.c.l.b16 %v1209
        %v1319 = vunpack.c.l.b16 %v1210
        %v1320 = vunpack.c.l.b16 %v1211
        %v1321 = vunpack.c.l.b16 %v1212
        %v1322 = vunpack.c.l.b16 %v1213
        %v1323 = vunpack.c.l.b16 %v1214
        %v1324 = vpack.c.b16 %v1277, %v1276
        %v1325 = vpack.c.b16 %v1279, %v1278
        %v1326 = vpack.c.b16 %v1281, %v1280
        %v1327 = vpack.c.b16 %v1283, %v1282
        %v1328 = vpack.c.b16 %v1285, %v1284
        %v1329 = vpack.c.b16 %v1287, %v1286
        %v1330 = vpack.c.b16 %v1289, %v1288
        %v1331 = vpack.c.b16 %v1291, %v1290
        %v1332 = vpack.c.b16 %v1293, %v1292
        %v1333 = vpack.c.b16 %v1295, %v1294
        %v1334 = vpack.c.b16 %v1297, %v1296
        %v1335 = vpack.c.b16 %v1299, %v1298
        %v1336 = vpack.c.b16 %v1301, %v1300
        %v1337 = vpack.c.b16 %v1303, %v1302
        %v1338 = vpack.c.b16 %v1305, %v1304
        %v1339 = vpack.c.b16 %v1307, %v1306
        %v1340 = vpack.c.b16 %v1309, %v1308
        %v1341 = vpack.c.b16 %v1311, %v1310
        %v1342 = vpack.c.b16 %v1313, %v1312
        %v1343 = vpack.c.b16 %v1315, %v1314
        %v1344 = vpack.c.b16 %v1317, %v1316
        %v1345 = vpack.c.b16 %v1319, %v1318
        %v1346 = vpack.c.b16 %v1321, %v1320
        %v1347 = vpack.c.b16 %v1323, %v1322
        %1372 = vmatpush.bf16.msra.mxu0 %v1331
        %1373 = vmatpush.bf16.msra.mxu0 %v1330
        %1374 = vmatpush.bf16.msra.mxu0 %v1329
        %1375 = vmatpush.bf16.msra.mxu0 %v1328
        %1376 = vmatpush.bf16.msra.mxu0 %v1327
        %1377 = vmatpush.bf16.msra.mxu0 %v1326
        %1378 = vmatpush.bf16.msra.mxu0 %v1325
        %1379 = vmatpush.bf16.msra.mxu0 %v1324
        %1380 = vmatmul.bf16.gmra.mxu0 %v1222
        %v1381 = vpop.f32.mrf.mxu0
        %v1382 = vadd.f32 %v1226, %v1381
        %v1383 = vpop.f32.mrf.mxu0
        %1384 = vdwg.mxu0
        %1385 = vmatpush.bf16.msra.mxu0 %v1339
        %1386 = vmatpush.bf16.msra.mxu0 %v1338
        %1387 = vmatpush.bf16.msra.mxu0 %v1337
        %1388 = vmatpush.bf16.msra.mxu0 %v1336
        %1389 = vmatpush.bf16.msra.mxu0 %v1335
        %1390 = vmatpush.bf16.msra.mxu0 %v1334
        %1391 = vmatpush.bf16.msra.mxu0 %v1333
        %1392 = vmatpush.bf16.msra.mxu0 %v1332
        %1393 = vmatmul.bf16.gmra.mxu0 %v1223
        %v1394 = vpop.f32.mrf.mxu0
        %v1395 = vadd.f32 %v1382, %v1394
        %v1396 = vpop.f32.mrf.mxu0
        %1397 = vdwg.mxu0
        %1398 = vmatpush.bf16.msra.mxu0 %v1347
        %1399 = vmatpush.bf16.msra.mxu0 %v1346
        %1400 = vmatpush.bf16.msra.mxu0 %v1345
        %1401 = vmatpush.bf16.msra.mxu0 %v1344
        %1402 = vmatpush.bf16.msra.mxu0 %v1343
        %1403 = vmatpush.bf16.msra.mxu0 %v1342
        %1404 = vmatpush.bf16.msra.mxu0 %v1341
        %1405 = vmatpush.bf16.msra.mxu0 %v1340
        %1406 = vmatmul.bf16.gmra.mxu0 %v1224
        %v1407 = vpop.f32.mrf.mxu0
        %v1408 = vadd.f32 %v1395, %v1407
        %v1409 = vpop.f32.mrf.mxu0
        %1410 = vdwg.mxu0
        %v1411 = vmax.f32 %v1408, 0.0
        %1412 = vadd.xlane.f32.xlu0 %v1411
        %v1413 = vpop.xlane.xlu0 %1412
        %v1414 = vmul.f32 %v1413, 0.03125
        %v1415 = vmul.f32 %v1411, %v1411
        %1416 = vadd.xlane.f32.xlu0 %v1415
        %v1417 = vpop.xlane.xlu0 %1416
        %v1418 = vmul.f32 %v1417, 0.03125
        %v1419 = vmul.f32 %v1414, %v1414
        %v1420 = vsub.f32 %v1418, %v1419
        %v1421 = vsub.f32 %v1411, %v1414
        %v1422 = vadd.f32 %v1420, 1e-05
        %v1423 = vrsqrt.pop %v1422
        %v1424 = vmul.f32 %v1423, %v1422
        %v1425 = vmul.f32 %v1424, %v1423
        %v1426 = vmul.f32 0.5, %v1425
        %v1427 = vsub.f32 1.5, %v1426
        %v1428 = vmul.f32 %v1423, %v1427
        %vm1429 = vweird.f32 %v1422
        %vm1430 = vweird.f32 %v1423
        %vm1431 = vmor %vm1429, %vm1430
        %v1432 = vsel %vm1431, %v1423, %v1428
        %v1433 = vmul.f32 %v1421, %v1432
        %v1435 = vperm.slane %v1216, 0
        %v1437 = vmul.f32 %v1433, %v1435
        %v1439 = vperm.slane %v1217, 0
        %v1441 = vadd.f32 %v1437, %v1439
        %v1442 = vld [vmem:[%s11] sm:$0x1]
        %v1444 = vperm.slane %v1442, 0
        %v1446 = vmul.f32 %v1441, %v1444
        %1447 = vadd.xlane.f32.xlu0 %v1446
        %v1448 = vpop.xlane.xlu0 %1447
        %v1449 = vld [vmem:[#allocation2] sm:$0x1]
        %v1451 = vperm.slane %v1449, 0
        %v1453 = vadd.f32 %v1448, %v1451
        %vm1454 = vcmask 7168
        %1455 = vst.msk [vmem:[%s525] sm:$0xff] %vm1454, %v1453
        %p1456 = scmp.lt.s32.totalorder %s31, 1
        %s1457 = scalar_select %p1456, %s31, 1
        %s1458 = smul.addr %s1457, 8
        %s1459 = scalar_lea.vmem %s13, %s1458
        // Predicated region
        $region93: #{tpu_custom_call.1} parent=71 // pred_check
          %p1460 = pneg %p327
        $region94: #{tpu_custom_call.1} parent=71 // pred_check_branch
          %1462 = sbr.rel (%p1460) target = $region96
        $region95: #{tpu_custom_call.1} parent=71 // pred_region
          _
        $region96: #{tpu_custom_call.1} parent=71 // pred_fallthru
          _
      $region72: #{tpu_custom_call.1} parent=5 // pred_fallthru
        _
      %p1463 = scmp.le.s32.totalorder 2, %s26
      // Predicated region
      $region97: #{tpu_custom_call.1} parent=5 // pred_check
        %p1464 = pneg %p1463
      $region98: #{tpu_custom_call.1} parent=5 // pred_check_branch
        %1466 = sbr.rel (%p1464) target = $region100
      $region99: #{tpu_custom_call.1} parent=5 // pred_region
        %s1467 = ssub.s32 %s26, 2
        // Predicated region
        $region101: #{tpu_custom_call.1} parent=99 // pred_check
          %p1468 = pneg %p333
        $region102: #{tpu_custom_call.1} parent=99 // pred_check_branch
          %1470 = sbr.rel (%p1468) target = $region104
        $region103: #{tpu_custom_call.1} parent=99 // pred_region
          %p1471 = scmp.lt.s32.totalorder %s32, 1
          %s1472 = scalar_select %p1471, %s32, 1
          %s1473 = smul.addr %s1472, 8
          %s1474 = scalar_lea.vmem %s13, %s1473
        $region104: #{tpu_custom_call.1} parent=99 // pred_fallthru
          _
      $region100: #{tpu_custom_call.1} parent=5 // pred_fallthru
        _
    $region6: #{tpu_custom_call.1} parent=1 // loop_footer
      %s30 = sadd.s32 1, %s26
    $region7: #{tpu_custom_call.1} parent=1 // loop_footer_branch
      %25 = sbr.rel target = $region3
    $region8: #{tpu_custom_call.1} parent=1 // loop_exit
      _
    %1475 = vsyncpa [#allocation4], 1
    %s1476 = scalar_lea.sflag [#allocation4], 1
    %1477 = vsyncpa %s1476, 1
    %1478 = vsyncpa [#allocation6], 1
    %1479 = vsyncpa [#allocation9], 1

</llo_original>
